<compile_context>
chip_gen: v7x
topology: tpu7x:2x2x1
jax: 0.10.0
libtpu: 0.0.40
codegen_flags: <defaults>
</compile_context>

<pallas_src>
import jax
import jax.numpy as jnp
from jax.experimental import pallas as pl
from jax.experimental.pallas import tpu as pltpu

LANE = 128


def _round_up(n, m):
    return ((n + m - 1) // m) * m


def _tensorcores_per_chip():
    # v7x (and v4 megacore) expose 2 TensorCores behind one device; v5e/v6e
    # have a single TC.  Detection is best-effort and affects perf only.
    try:
        kind = jax.devices()[0].device_kind.lower()
    except Exception:
        return 1
    return 2 if ("v7" in kind or "v4" in kind) else 1


def nn_energy_kernel(x_ref, w1_ref, b1_ref, w2_ref, b2_ref, o_ref):
    # Hidden layer on the MXU (f32 accumulation); tanh goes to the EUP slot.
    h = jnp.tanh(
        jnp.dot(x_ref[...], w1_ref[...], preferred_element_type=jnp.float32)
        + b1_ref[...]
    )
    # Output layer in the natural MXU orientation: contract h's last (lane)
    # axis against the (hidden, 1) weight column -> (bt, 1).  Only this tiny
    # column is then transposed (XLU) to the lane-dense (1, bt) output row,
    # instead of forcing a relayout of the whole (bt, hidden) h.
    z_col = jnp.dot(h, w2_ref[...], preferred_element_type=jnp.float32)   # (bt, 1)
    z = jnp.transpose(z_col) + b2_ref[0]                                  # (1, bt)
    # Numerically stable softplus: max(z, 0) + log1p(exp(-|z|)).
    o_ref[...] = (jnp.maximum(z, 0.0) + jnp.log1p(jnp.exp(-jnp.abs(z)))).astype(
        o_ref.dtype
    )


def nn_energy(x, w1, b1, w2, b2, *, num_cores=None, max_tile_rows=4096,
              tile_vmem_budget_bytes=12 << 20):
    """x: [B, input_dim] -> positive energies of shape [B, 1]."""
    B, input_dim = x.shape
    hidden_dim = w1.shape[1]
    if num_cores is None:
        num_cores = _tensorcores_per_chip()

    lane_pad = lambda n: _round_up(n, LANE)

    # --- Batch-tile selection --------------------------------------------
    # Per-row VMEM footprint in the pipeline: double-buffered x row plus the
    # h / post-tanh intermediates and the output element (lane-padded f32).
    bytes_per_row = (2 * lane_pad(input_dim) + 3 * lane_pad(hidden_dim) + 16) * 4
    bt_cap = max(LANE, (tile_vmem_budget_bytes // bytes_per_row) // LANE * LANE)
    bt_cap = min(bt_cap, _round_up(max_tile_rows, LANE))

    Bp0 = _round_up(B, LANE)                        # lane-dense output rows
    if Bp0 >= num_cores * LANE:
        per_core = _round_up(pl.cdiv(Bp0, num_cores), LANE)
    else:
        per_core = Bp0                              # tiny batch: one step
    bt = min(per_core, bt_cap)
    n_tiles = pl.cdiv(Bp0, bt)
    if Bp0 >= num_cores * LANE:
        n_tiles = _round_up(n_tiles, num_cores)     # equal work per TensorCore
    bt = _round_up(pl.cdiv(Bp0, n_tiles), LANE)     # rebalance tiles (stays <= bt_cap)
    Bp = n_tiles * bt

    if Bp != B:                                     # ragged batch: pad (rows are independent)
        x = jnp.pad(x, ((0, Bp - B), (0, 0)))

    # --- VMEM limit (v7x only has 64 MiB physical) -------------------------
    needed = (2 * bt * lane_pad(input_dim)          # x, double-buffered
              + 2 * 8 * lane_pad(bt)                # (1, bt) out, double-buffered
              + 3 * bt * lane_pad(hidden_dim)       # h and temporaries
              + _round_up(input_dim, 8) * lane_pad(hidden_dim)
              + 8 * lane_pad(hidden_dim)
              + _round_up(hidden_dim, 8) * LANE) * 4
    vmem_limit = int(min(56 << 20, max(32 << 20, 2 * needed)))

    out = pl.pallas_call(
        nn_energy_kernel,
        out_shape=jax.ShapeDtypeStruct((1, Bp), jnp.float32),
        grid_spec=pltpu.PrefetchScalarGridSpec(
            num_scalar_prefetch=0,
            grid=(n_tiles,),
            in_specs=[
                # x: tiled over batch (sublane axis), features on the lane axis.
                pl.BlockSpec((bt, input_dim), lambda i: (i, 0)),
                # Constant weight/bias blocks: same block every step ->
                # single-buffered (double-buffering a constant block buys nothing).
                pl.BlockSpec((input_dim, hidden_dim), lambda i: (0, 0),
                             pipeline_mode=pl.Buffered(1)),
                pl.BlockSpec((1, hidden_dim), lambda i: (0, 0),
                             pipeline_mode=pl.Buffered(1)),
                pl.BlockSpec((hidden_dim, 1), lambda i: (0, 0),
                             pipeline_mode=pl.Buffered(1)),
                # b2: true scalar on the scalar path (1-D SMEM, ~4 B).
                pl.BlockSpec(memory_space=pltpu.MemorySpace.SMEM),
            ],
            # Lane-dense output: one (1, bt) row per step into a (1, Bp) slab.
            out_specs=pl.BlockSpec((1, bt), lambda i: (0, i)),
        ),
        compiler_params=pltpu.CompilerParams(
            dimension_semantics=("parallel",),
            vmem_limit_bytes=vmem_limit,
        ),
    )(x, w1, b1, w2, b2)
    # Layout plumbing only: (1, Bp) lane-dense row -> (B, 1) column.
    return out[0, :B].reshape(B, 1)


def _reference(x, w1, b1, w2, b2):
    h = jnp.tanh(x @ w1 + b1)
    z = h @ w2 + b2[0]
    return jnp.maximum(z, 0.0) + jnp.log1p(jnp.exp(-jnp.abs(z)))


def _make_params(key, input_dim, hidden_dim):
    # PyTorch-style uniform(+-1/sqrt(fan_in)) init, stored in kernel layout.
    k1, k2, k3, k4 = jax.random.split(key, 4)
    bound1 = 1.0 / (input_dim ** 0.5)
    w1 = jax.random.uniform(k1, (input_dim, hidden_dim), jnp.float32, -bound1, bound1)
    b1 = jax.random.uniform(k2, (1, hidden_dim), jnp.float32, -bound1, bound1)
    bound2 = 1.0 / (hidden_dim ** 0.5)
    w2 = jax.random.uniform(k3, (hidden_dim, 1), jnp.float32, -bound2, bound2)
    b2 = jax.random.uniform(k4, (1,), jnp.float32, -bound2, bound2)
    return w1, b1, w2, b2


if __name__ == "__main__":
    input_dim, hidden_dim = 32, 32

    key = jax.random.PRNGKey(0)
    kx, kx_ragged, kx_small, kp = jax.random.split(key, 4)
    w1, b1, w2, b2 = _make_params(kp, input_dim, hidden_dim)

    # Main case: batch large enough that every step moves a fat tile and the
    # grid splits evenly across TensorCores on v7x (grid = 1 on v5e/v6e).
    x = jax.random.normal(kx, (1024, input_dim), dtype=jnp.float32)
    out = jax.block_until_ready(nn_energy(x, w1, b1, w2, b2))
    ref = _reference(x, w1, b1, w2, b2)
    assert out.shape == (1024, 1)
    assert bool(jnp.all(out > 0.0))                 # softplus output is strictly positive
    assert bool(jnp.allclose(out, ref, atol=1e-4, rtol=1e-4))

    # Ragged batch: exercises the padding path (padded rows are sliced off).
    xr = jax.random.normal(kx_ragged, (300, input_dim), dtype=jnp.float32)
    out_r = jax.block_until_ready(nn_energy(xr, w1, b1, w2, b2))
    ref_r = _reference(xr, w1, b1, w2, b2)
    assert out_r.shape == (300, 1)
    assert bool(jnp.all(out_r > 0.0))
    assert bool(jnp.allclose(out_r, ref_r, atol=1e-4, rtol=1e-4))

    # Tiny batch: clamps to one 128-row tile, grid = (1,).
    xs = jax.random.normal(kx_small, (16, input_dim), dtype=jnp.float32)
    out_s = jax.block_until_ready(nn_energy(xs, w1, b1, w2, b2))
    ref_s = _reference(xs, w1, b1, w2, b2)
    assert out_s.shape == (16, 1)
    assert bool(jnp.all(out_s > 0.0))
    assert bool(jnp.allclose(out_s, ref_s, atol=1e-4, rtol=1e-4))

    print("KERNEL_OK")
</pallas_src>

<mosaic_0001>
module attributes {stable_mosaic.version = 11 : i64} {
  func.func @nn_energy_kernel(%arg0: i32, %arg1: memref<1024x32xf32, #tpu.memory_space<vmem>>, %arg2: memref<32x32xf32, #tpu.memory_space<vmem>>, %arg3: memref<1x32xf32, #tpu.memory_space<vmem>>, %arg4: memref<32x1xf32, #tpu.memory_space<vmem>>, %arg5: memref<1xf32, #tpu.memory_space<smem>>, %arg6: memref<1x1024xf32, #tpu.memory_space<vmem>>) attributes {dimension_semantics = [#tpu.dimension_semantics<parallel>], iteration_bounds = array<i64: 1>, scalar_prefetch = 0 : i64, scratch_operands = 0 : i64, tpu.core_type = #tpu.core_type<tc>, window_params = [{transform_indices = @transform_0, window_bounds = array<i64: 1024, 32>}, {pipeline_mode = #tpu.pipeline_mode<synchronous>, transform_indices = @transform_1, window_bounds = array<i64: 32, 32>}, {pipeline_mode = #tpu.pipeline_mode<synchronous>, transform_indices = @transform_2, window_bounds = array<i64: 1, 32>}, {pipeline_mode = #tpu.pipeline_mode<synchronous>, transform_indices = @transform_3, window_bounds = array<i64: 32, 1>}, {transform_indices = @transform_4, window_bounds = array<i64: 1>}, {transform_indices = @transform_5, window_bounds = array<i64: 1, 1024>}]} {
    %c0 = arith.constant 0 : index
    %c0_0 = arith.constant 0 : index
    %0 = vector.load %arg1[%c0, %c0_0] : memref<1024x32xf32, #tpu.memory_space<vmem>>, vector<1024x32xf32>
    %c0_1 = arith.constant 0 : index
    %c0_2 = arith.constant 0 : index
    %1 = vector.load %arg2[%c0_1, %c0_2] : memref<32x32xf32, #tpu.memory_space<vmem>>, vector<32x32xf32>
    %cst = arith.constant dense<0.000000e+00> : vector<1024x32xf32>
    %2 = tpu.matmul %0, %1, %cst {dimension_numbers = #tpu.dot_dimension_numbers<[1], [0], [0], [1], [0, 0, 1, 1], [], []>} : vector<1024x32xf32>, vector<32x32xf32>, vector<1024x32xf32> -> vector<1024x32xf32>
    %c0_3 = arith.constant 0 : index
    %c0_4 = arith.constant 0 : index
    %3 = vector.load %arg3[%c0_3, %c0_4] : memref<1x32xf32, #tpu.memory_space<vmem>>, vector<1x32xf32>
    %4 = vector.broadcast %3 : vector<1x32xf32> to vector<1024x32xf32>
    %5 = arith.addf %2, %4 : vector<1024x32xf32>
    %6 = math.tanh %5 : vector<1024x32xf32>
    %c0_5 = arith.constant 0 : index
    %c0_6 = arith.constant 0 : index
    %7 = vector.load %arg4[%c0_5, %c0_6] : memref<32x1xf32, #tpu.memory_space<vmem>>, vector<32x1xf32>
    %cst_7 = arith.constant dense<0.000000e+00> : vector<1024x1xf32>
    %8 = tpu.matmul %6, %7, %cst_7 {dimension_numbers = #tpu.dot_dimension_numbers<[1], [0], [0], [1], [0, 0, 1, 1], [], []>} : vector<1024x32xf32>, vector<32x1xf32>, vector<1024x1xf32> -> vector<1024x1xf32>
    %9 = tpu.transpose %8, [1, 0] : vector<1024x1xf32> -> vector<1x1024xf32>
    %c0_8 = arith.constant 0 : index
    %10 = memref.load %arg5[%c0_8] : memref<1xf32, #tpu.memory_space<smem>>
    %11 = vector.broadcast %10 : f32 to vector<1x1024xf32>
    %12 = arith.addf %9, %11 : vector<1x1024xf32>
    %cst_9 = arith.constant 0.000000e+00 : f32
    %13 = vector.broadcast %cst_9 : f32 to vector<1x1024xf32>
    %14 = arith.maximumf %12, %13 : vector<1x1024xf32>
    %15 = math.absf %12 : vector<1x1024xf32>
    %cst_10 = arith.constant 0.000000e+00 : f32
    %16 = vector.broadcast %cst_10 : f32 to vector<1x1024xf32>
    %17 = arith.subf %16, %15 : vector<1x1024xf32>
    %18 = math.exp %17 : vector<1x1024xf32>
    %19 = math.log1p %18 : vector<1x1024xf32>
    %20 = arith.addf %14, %19 : vector<1x1024xf32>
    %c0_11 = arith.constant 0 : index
    %c0_12 = arith.constant 0 : index
    %21 = vector.load %arg6[%c0_11, %c0_12] : memref<1x1024xf32, #tpu.memory_space<vmem>>, vector<1x1024xf32>
    tpu.vector_store %arg6[%c0_11, %c0_12], %20 {strides = array<i32>} : memref<1x1024xf32, #tpu.memory_space<vmem>>, vector<1x1024xf32>,
    return
  }
  func.func @transform_0(%arg0: i32) -> (i32, i32) {
    %c0_i32 = arith.constant 0 : i32
    %c0_i32_0 = arith.constant 0 : i32
    return %arg0, %c0_i32 : i32, i32
  }
  func.func @transform_1(%arg0: i32) -> (i32, i32) {
    %c0_i32 = arith.constant 0 : i32
    %c0_i32_0 = arith.constant 0 : i32
    %c0_i32_1 = arith.constant 0 : i32
    return %c0_i32, %c0_i32_0 : i32, i32
  }
  func.func @transform_2(%arg0: i32) -> (i32, i32) {
    %c0_i32 = arith.constant 0 : i32
    %c0_i32_0 = arith.constant 0 : i32
    %c0_i32_1 = arith.constant 0 : i32
    return %c0_i32, %c0_i32_0 : i32, i32
  }
  func.func @transform_3(%arg0: i32) -> (i32, i32) {
    %c0_i32 = arith.constant 0 : i32
    %c0_i32_0 = arith.constant 0 : i32
    %c0_i32_1 = arith.constant 0 : i32
    return %c0_i32, %c0_i32_0 : i32, i32
  }
  func.func @transform_4(%arg0: i32) -> i32 {
    %c0_i32 = arith.constant 0 : i32
    %c0_i32_0 = arith.constant 0 : i32
    return %c0_i32 : i32
  }
  func.func @transform_5(%arg0: i32) -> (i32, i32) {
    %c0_i32 = arith.constant 0 : i32
    %c0_i32_0 = arith.constant 0 : i32
    return %c0_i32, %arg0 : i32, i32
  }
}

</mosaic_0001>

<llo_original>
// kernel: tpu_custom_call.1
$region0: #{tpu_custom_call.1}
  #allocation0 [shape = 'u32[]', space=smem, size = 0x4, offset = 0x4, fixed_abs, tag = 'smem constant byte address 0x4 - core index']
  #allocation1 [shape = 'u32[144,128]{1,0:T(1,128)}', space=vmem, size = 0x12000, scoped, tag = 'internal scratch']
  #allocation2 [shape = 'f32[1]{0:T(128)S(6)}', space=smem, size = 0x200, scoped, tag = 'scoped memory for tpu_custom_call.1']
  %s0 = inlined_call_operand.vmem [shape: f32[1024,32], index: 0, kind: input, shape index: {}]
  %s1 = inlined_call_operand.vmem [shape: f32[32,32], index: 1, kind: input, shape index: {}]
  %s2 = inlined_call_operand.vmem [shape: f32[1,32], index: 2, kind: input, shape index: {}]
  %s3 = inlined_call_operand.vmem [shape: f32[32,1], index: 3, kind: input, shape index: {}]
  %s4 = inlined_call_operand.<no memory space> [shape: f32[1], index: 4, kind: input, shape index: {}]
  %s5 = inlined_call_operand.hbm [shape: f32[1,1024], index: 5, kind: output, shape index: {}]
  %s6 = sld [smem:[#allocation0]]
  $region30: #{tpu_custom_call.1} parent=0
    _
  %s8 = ssub.s32 1, %s6
  %s9 = scalar_select 0, %s8, %s6
  %10 = sst [smem:[#allocation2]] %s4
  $region1: #{tpu_custom_call.1} parent=0
    #allocation3 [shape = 'u8[4096]{0}', space=vmem, size = 0x1000, scoped, tag = 'output window, operand 0, single buffered']
    #allocation4 [shape = 's32[1]{0}', space=sflag, size = 0x4, scoped, tag = 'scoped memory for tpu_custom_call.1']
    %11 = vsyncpa [#allocation4], 0
    // Predicated region
    $region2: #{tpu_custom_call.1} parent=1 // pred_check
      _
    $region3: #{tpu_custom_call.1} parent=1 // pred_check_branch
      %13 = sbr.rel (0) target = $region5
    $region4: #{tpu_custom_call.1} parent=1 // pred_region
      _
    $region5: #{tpu_custom_call.1} parent=1 // pred_fallthru
      _
    // Predicated region
    $region6: #{tpu_custom_call.1} parent=1 // pred_check
      _
    $region7: #{tpu_custom_call.1} parent=1 // pred_check_branch
      %15 = sbr.rel (0) target = $region9
    $region8: #{tpu_custom_call.1} parent=1 // pred_region
      _
    $region9: #{tpu_custom_call.1} parent=1 // pred_fallthru
      _
    // Predicated region
    $region10: #{tpu_custom_call.1} parent=1 // pred_check
      _
    $region11: #{tpu_custom_call.1} parent=1 // pred_check_branch
      %17 = sbr.rel (0) target = $region13
    $region12: #{tpu_custom_call.1} parent=1 // pred_region
      _
    $region13: #{tpu_custom_call.1} parent=1 // pred_fallthru
      _
    // Predicated region
    $region14: #{tpu_custom_call.1} parent=1 // pred_check
      _
    $region15: #{tpu_custom_call.1} parent=1 // pred_check_branch
      %19 = sbr.rel (0) target = $region17
    $region16: #{tpu_custom_call.1} parent=1 // pred_region
      _
    $region17: #{tpu_custom_call.1} parent=1 // pred_fallthru
      _
    // Predicated region
    $region18: #{tpu_custom_call.1} parent=1 // pred_check
      _
    $region19: #{tpu_custom_call.1} parent=1 // pred_check_branch
      %21 = sbr.rel (0) target = $region21
    $region20: #{tpu_custom_call.1} parent=1 // pred_region
      _
    $region21: #{tpu_custom_call.1} parent=1 // pred_fallthru
      _
    %v22 = vld [vmem:[%s0] sm:$0xff]
    %v23 = vld [vmem:[%s0 + $0x8] sm:$0xff]
    %v24 = vld [vmem:[%s0 + $0x10] sm:$0xff]
    %v25 = vld [vmem:[%s0 + $0x18] sm:$0xff]
    %v26 = vld [vmem:[%s0 + $0x20] sm:$0xff]
    %v27 = vld [vmem:[%s0 + $0x28] sm:$0xff]
    %v28 = vld [vmem:[%s0 + $0x30] sm:$0xff]
    %v29 = vld [vmem:[%s0 + $0x38] sm:$0xff]
    %v30 = vld [vmem:[%s0 + $0x40] sm:$0xff]
    %v31 = vld [vmem:[%s0 + $0x48] sm:$0xff]
    %v32 = vld [vmem:[%s0 + $0x50] sm:$0xff]
    %v33 = vld [vmem:[%s0 + $0x58] sm:$0xff]
    %v34 = vld [vmem:[%s0 + $0x60] sm:$0xff]
    %v35 = vld [vmem:[%s0 + $0x68] sm:$0xff]
    %v36 = vld [vmem:[%s0 + $0x70] sm:$0xff]
    %v37 = vld [vmem:[%s0 + $0x78] sm:$0xff]
    %v38 = vld [vmem:[%s0 + $0x80] sm:$0xff]
    %v39 = vld [vmem:[%s0 + $0x88] sm:$0xff]
    %v40 = vld [vmem:[%s0 + $0x90] sm:$0xff]
    %v41 = vld [vmem:[%s0 + $0x98] sm:$0xff]
    %v42 = vld [vmem:[%s0 + $0xa0] sm:$0xff]
    %v43 = vld [vmem:[%s0 + $0xa8] sm:$0xff]
    %v44 = vld [vmem:[%s0 + $0xb0] sm:$0xff]
    %v45 = vld [vmem:[%s0 + $0xb8] sm:$0xff]
    %v46 = vld [vmem:[%s0 + $0xc0] sm:$0xff]
    %v47 = vld [vmem:[%s0 + $0xc8] sm:$0xff]
    %v48 = vld [vmem:[%s0 + $0xd0] sm:$0xff]
    %v49 = vld [vmem:[%s0 + $0xd8] sm:$0xff]
    %v50 = vld [vmem:[%s0 + $0xe0] sm:$0xff]
    %v51 = vld [vmem:[%s0 + $0xe8] sm:$0xff]
    %v52 = vld [vmem:[%s0 + $0xf0] sm:$0xff]
    %v53 = vld [vmem:[%s0 + $0xf8] sm:$0xff]
    %v54 = vld [vmem:[%s0 + $0x100] sm:$0xff]
    %v55 = vld [vmem:[%s0 + $0x108] sm:$0xff]
    %v56 = vld [vmem:[%s0 + $0x110] sm:$0xff]
    %v57 = vld [vmem:[%s0 + $0x118] sm:$0xff]
    %v58 = vld [vmem:[%s0 + $0x120] sm:$0xff]
    %v59 = vld [vmem:[%s0 + $0x128] sm:$0xff]
    %v60 = vld [vmem:[%s0 + $0x130] sm:$0xff]
    %v61 = vld [vmem:[%s0 + $0x138] sm:$0xff]
    %v62 = vld [vmem:[%s0 + $0x140] sm:$0xff]
    %v63 = vld [vmem:[%s0 + $0x148] sm:$0xff]
    %v64 = vld [vmem:[%s0 + $0x150] sm:$0xff]
    %v65 = vld [vmem:[%s0 + $0x158] sm:$0xff]
    %v66 = vld [vmem:[%s0 + $0x160] sm:$0xff]
    %v67 = vld [vmem:[%s0 + $0x168] sm:$0xff]
    %v68 = vld [vmem:[%s0 + $0x170] sm:$0xff]
    %v69 = vld [vmem:[%s0 + $0x178] sm:$0xff]
    %v70 = vld [vmem:[%s0 + $0x180] sm:$0xff]
    %v71 = vld [vmem:[%s0 + $0x188] sm:$0xff]
    %v72 = vld [vmem:[%s0 + $0x190] sm:$0xff]
    %v73 = vld [vmem:[%s0 + $0x198] sm:$0xff]
    %v74 = vld [vmem:[%s0 + $0x1a0] sm:$0xff]
    %v75 = vld [vmem:[%s0 + $0x1a8] sm:$0xff]
    %v76 = vld [vmem:[%s0 + $0x1b0] sm:$0xff]
    %v77 = vld [vmem:[%s0 + $0x1b8] sm:$0xff]
    %v78 = vld [vmem:[%s0 + $0x1c0] sm:$0xff]
    %v79 = vld [vmem:[%s0 + $0x1c8] sm:$0xff]
    %v80 = vld [vmem:[%s0 + $0x1d0] sm:$0xff]
    %v81 = vld [vmem:[%s0 + $0x1d8] sm:$0xff]
    %v82 = vld [vmem:[%s0 + $0x1e0] sm:$0xff]
    %v83 = vld [vmem:[%s0 + $0x1e8] sm:$0xff]
    %v84 = vld [vmem:[%s0 + $0x1f0] sm:$0xff]
    %v85 = vld [vmem:[%s0 + $0x1f8] sm:$0xff]
    %v86 = vld [vmem:[%s0 + $0x200] sm:$0xff]
    %v87 = vld [vmem:[%s0 + $0x208] sm:$0xff]
    %v88 = vld [vmem:[%s0 + $0x210] sm:$0xff]
    %v89 = vld [vmem:[%s0 + $0x218] sm:$0xff]
    %v90 = vld [vmem:[%s0 + $0x220] sm:$0xff]
    %v91 = vld [vmem:[%s0 + $0x228] sm:$0xff]
    %v92 = vld [vmem:[%s0 + $0x230] sm:$0xff]
    %v93 = vld [vmem:[%s0 + $0x238] sm:$0xff]
    %v94 = vld [vmem:[%s0 + $0x240] sm:$0xff]
    %v95 = vld [vmem:[%s0 + $0x248] sm:$0xff]
    %v96 = vld [vmem:[%s0 + $0x250] sm:$0xff]
    %v97 = vld [vmem:[%s0 + $0x258] sm:$0xff]
    %v98 = vld [vmem:[%s0 + $0x260] sm:$0xff]
    %v99 = vld [vmem:[%s0 + $0x268] sm:$0xff]
    %v100 = vld [vmem:[%s0 + $0x270] sm:$0xff]
    %v101 = vld [vmem:[%s0 + $0x278] sm:$0xff]
    %v102 = vld [vmem:[%s0 + $0x280] sm:$0xff]
    %v103 = vld [vmem:[%s0 + $0x288] sm:$0xff]
    %v104 = vld [vmem:[%s0 + $0x290] sm:$0xff]
    %v105 = vld [vmem:[%s0 + $0x298] sm:$0xff]
    %v106 = vld [vmem:[%s0 + $0x2a0] sm:$0xff]
    %v107 = vld [vmem:[%s0 + $0x2a8] sm:$0xff]
    %v108 = vld [vmem:[%s0 + $0x2b0] sm:$0xff]
    %v109 = vld [vmem:[%s0 + $0x2b8] sm:$0xff]
    %v110 = vld [vmem:[%s0 + $0x2c0] sm:$0xff]
    %v111 = vld [vmem:[%s0 + $0x2c8] sm:$0xff]
    %v112 = vld [vmem:[%s0 + $0x2d0] sm:$0xff]
    %v113 = vld [vmem:[%s0 + $0x2d8] sm:$0xff]
    %v114 = vld [vmem:[%s0 + $0x2e0] sm:$0xff]
    %v115 = vld [vmem:[%s0 + $0x2e8] sm:$0xff]
    %v116 = vld [vmem:[%s0 + $0x2f0] sm:$0xff]
    %v117 = vld [vmem:[%s0 + $0x2f8] sm:$0xff]
    %v118 = vld [vmem:[%s0 + $0x300] sm:$0xff]
    %v119 = vld [vmem:[%s0 + $0x308] sm:$0xff]
    %v120 = vld [vmem:[%s0 + $0x310] sm:$0xff]
    %v121 = vld [vmem:[%s0 + $0x318] sm:$0xff]
    %v122 = vld [vmem:[%s0 + $0x320] sm:$0xff]
    %v123 = vld [vmem:[%s0 + $0x328] sm:$0xff]
    %v124 = vld [vmem:[%s0 + $0x330] sm:$0xff]
    %v125 = vld [vmem:[%s0 + $0x338] sm:$0xff]
    %v126 = vld [vmem:[%s0 + $0x340] sm:$0xff]
    %v127 = vld [vmem:[%s0 + $0x348] sm:$0xff]
    %v128 = vld [vmem:[%s0 + $0x350] sm:$0xff]
    %v129 = vld [vmem:[%s0 + $0x358] sm:$0xff]
    %v130 = vld [vmem:[%s0 + $0x360] sm:$0xff]
    %v131 = vld [vmem:[%s0 + $0x368] sm:$0xff]
    %v132 = vld [vmem:[%s0 + $0x370] sm:$0xff]
    %v133 = vld [vmem:[%s0 + $0x378] sm:$0xff]
    %v134 = vld [vmem:[%s0 + $0x380] sm:$0xff]
    %v135 = vld [vmem:[%s0 + $0x388] sm:$0xff]
    %v136 = vld [vmem:[%s0 + $0x390] sm:$0xff]
    %v137 = vld [vmem:[%s0 + $0x398] sm:$0xff]
    %v138 = vld [vmem:[%s0 + $0x3a0] sm:$0xff]
    %v139 = vld [vmem:[%s0 + $0x3a8] sm:$0xff]
    %v140 = vld [vmem:[%s0 + $0x3b0] sm:$0xff]
    %v141 = vld [vmem:[%s0 + $0x3b8] sm:$0xff]
    %v142 = vld [vmem:[%s0 + $0x3c0] sm:$0xff]
    %v143 = vld [vmem:[%s0 + $0x3c8] sm:$0xff]
    %v144 = vld [vmem:[%s0 + $0x3d0] sm:$0xff]
    %v145 = vld [vmem:[%s0 + $0x3d8] sm:$0xff]
    %v146 = vld [vmem:[%s0 + $0x3e0] sm:$0xff]
    %v147 = vld [vmem:[%s0 + $0x3e8] sm:$0xff]
    %v148 = vld [vmem:[%s0 + $0x3f0] sm:$0xff]
    %v149 = vld [vmem:[%s0 + $0x3f8] sm:$0xff]
    %v150 = vld [vmem:[%s1] sm:$0xff]
    %v151 = vld [vmem:[%s1 + $0x8] sm:$0xff]
    %v152 = vld [vmem:[%s1 + $0x10] sm:$0xff]
    %v153 = vld [vmem:[%s1 + $0x18] sm:$0xff]
    %v154 = vld [vmem:[%s2] sm:$0x1]
    %v156 = vlaneseq
    %v157 = vshrl.u32 %v156, 7
    %v158 = vsub.s32 0, %v157
    %v159 = vrot.slane %v154, %v158
    %vm161 = vcmask 261120
    %v163 = vsel %vm161, %v22, 0
    %v166 = vsel %vm161, %v23, 0
    %v169 = vsel %vm161, %v24, 0
    %v172 = vsel %vm161, %v25, 0
    %v175 = vsel %vm161, %v26, 0
    %v178 = vsel %vm161, %v27, 0
    %v181 = vsel %vm161, %v28, 0
    %v184 = vsel %vm161, %v29, 0
    %v187 = vsel %vm161, %v30, 0
    %v190 = vsel %vm161, %v31, 0
    %v193 = vsel %vm161, %v32, 0
    %v196 = vsel %vm161, %v33, 0
    %v199 = vsel %vm161, %v34, 0
    %v202 = vsel %vm161, %v35, 0
    %v205 = vsel %vm161, %v36, 0
    %v208 = vsel %vm161, %v37, 0
    %v211 = vsel %vm161, %v38, 0
    %v214 = vsel %vm161, %v39, 0
    %v217 = vsel %vm161, %v40, 0
    %v220 = vsel %vm161, %v41, 0
    %v223 = vsel %vm161, %v42, 0
    %v226 = vsel %vm161, %v43, 0
    %v229 = vsel %vm161, %v44, 0
    %v232 = vsel %vm161, %v45, 0
    %v235 = vsel %vm161, %v46, 0
    %v238 = vsel %vm161, %v47, 0
    %v241 = vsel %vm161, %v48, 0
    %v244 = vsel %vm161, %v49, 0
    %v247 = vsel %vm161, %v50, 0
    %v250 = vsel %vm161, %v51, 0
    %v253 = vsel %vm161, %v52, 0
    %v256 = vsel %vm161, %v53, 0
    %v259 = vsel %vm161, %v54, 0
    %v262 = vsel %vm161, %v55, 0
    %v265 = vsel %vm161, %v56, 0
    %v268 = vsel %vm161, %v57, 0
    %v271 = vsel %vm161, %v58, 0
    %v274 = vsel %vm161, %v59, 0
    %v277 = vsel %vm161, %v60, 0
    %v280 = vsel %vm161, %v61, 0
    %v283 = vsel %vm161, %v62, 0
    %v286 = vsel %vm161, %v63, 0
    %v289 = vsel %vm161, %v64, 0
    %v292 = vsel %vm161, %v65, 0
    %v295 = vsel %vm161, %v66, 0
    %v298 = vsel %vm161, %v67, 0
    %v301 = vsel %vm161, %v68, 0
    %v304 = vsel %vm161, %v69, 0
    %v307 = vsel %vm161, %v70, 0
    %v310 = vsel %vm161, %v71, 0
    %v313 = vsel %vm161, %v72, 0
    %v316 = vsel %vm161, %v73, 0
    %v319 = vsel %vm161, %v74, 0
    %v322 = vsel %vm161, %v75, 0
    %v325 = vsel %vm161, %v76, 0
    %v328 = vsel %vm161, %v77, 0
    %v331 = vsel %vm161, %v78, 0
    %v334 = vsel %vm161, %v79, 0
    %v337 = vsel %vm161, %v80, 0
    %v340 = vsel %vm161, %v81, 0
    %v343 = vsel %vm161, %v82, 0
    %v346 = vsel %vm161, %v83, 0
    %v349 = vsel %vm161, %v84, 0
    %v352 = vsel %vm161, %v85, 0
    %v355 = vsel %vm161, %v86, 0
    %v358 = vsel %vm161, %v87, 0
    %v361 = vsel %vm161, %v88, 0
    %v364 = vsel %vm161, %v89, 0
    %v367 = vsel %vm161, %v90, 0
    %v370 = vsel %vm161, %v91, 0
    %v373 = vsel %vm161, %v92, 0
    %v376 = vsel %vm161, %v93, 0
    %v379 = vsel %vm161, %v94, 0
    %v382 = vsel %vm161, %v95, 0
    %v385 = vsel %vm161, %v96, 0
    %v388 = vsel %vm161, %v97, 0
    %v391 = vsel %vm161, %v98, 0
    %v394 = vsel %vm161, %v99, 0
    %v397 = vsel %vm161, %v100, 0
    %v400 = vsel %vm161, %v101, 0
    %v403 = vsel %vm161, %v102, 0
    %v406 = vsel %vm161, %v103, 0
    %v409 = vsel %vm161, %v104, 0
    %v412 = vsel %vm161, %v105, 0
    %v415 = vsel %vm161, %v106, 0
    %v418 = vsel %vm161, %v107, 0
    %v421 = vsel %vm161, %v108, 0
    %v424 = vsel %vm161, %v109, 0
    %v427 = vsel %vm161, %v110, 0
    %v430 = vsel %vm161, %v111, 0
    %v433 = vsel %vm161, %v112, 0
    %v436 = vsel %vm161, %v113, 0
    %v439 = vsel %vm161, %v114, 0
    %v442 = vsel %vm161, %v115, 0
    %v445 = vsel %vm161, %v116, 0
    %v448 = vsel %vm161, %v117, 0
    %v451 = vsel %vm161, %v118, 0
    %v454 = vsel %vm161, %v119, 0
    %v457 = vsel %vm161, %v120, 0
    %v460 = vsel %vm161, %v121, 0
    %v463 = vsel %vm161, %v122, 0
    %v466 = vsel %vm161, %v123, 0
    %v469 = vsel %vm161, %v124, 0
    %v472 = vsel %vm161, %v125, 0
    %v475 = vsel %vm161, %v126, 0
    %v478 = vsel %vm161, %v127, 0
    %v481 = vsel %vm161, %v128, 0
    %v484 = vsel %vm161, %v129, 0
    %v487 = vsel %vm161, %v130, 0
    %v490 = vsel %vm161, %v131, 0
    %v493 = vsel %vm161, %v132, 0
    %v496 = vsel %vm161, %v133, 0
    %v499 = vsel %vm161, %v134, 0
    %v502 = vsel %vm161, %v135, 0
    %v505 = vsel %vm161, %v136, 0
    %v508 = vsel %vm161, %v137, 0
    %v511 = vsel %vm161, %v138, 0
    %v514 = vsel %vm161, %v139, 0
    %v517 = vsel %vm161, %v140, 0
    %v520 = vsel %vm161, %v141, 0
    %v523 = vsel %vm161, %v142, 0
    %v526 = vsel %vm161, %v143, 0
    %v529 = vsel %vm161, %v144, 0
    %v532 = vsel %vm161, %v145, 0
    %v535 = vsel %vm161, %v146, 0
    %v538 = vsel %vm161, %v147, 0
    %v541 = vsel %vm161, %v148, 0
    %v544 = vsel %vm161, %v149, 0
    %546 = vmatprep.subr.mxu0 0.0
    %547 = vmatpush1.msra.mxu0 %v150
    %548 = vmatprep.subr.mxu0 0.0
    %549 = vmatpush1.msra.mxu0 %v151
    %550 = vmatprep.subr.mxu0 0.0
    %551 = vmatpush1.msra.mxu0 %v152
    %552 = vmatprep.subr.mxu0 0.0
    %553 = vmatpush1.msra.mxu0 %v153
    %554 = vmatprep.subr.mxu0 0.0
    %555 = vmatpush1.msra.mxu0 0.0
    %556 = vmatprep.subr.mxu0 0.0
    %557 = vmatpush1.msra.mxu0 0.0
    %558 = vmatprep.subr.mxu0 0.0
    %559 = vmatpush1.msra.mxu0 0.0
    %560 = vmatprep.subr.mxu0 0.0
    %561 = vmatpush1.msra.mxu0 0.0
    %562 = vmatprep.subr.mxu0 0.0
    %563 = vmatpush1.msra.mxu0 0.0
    %564 = vmatprep.subr.mxu0 0.0
    %565 = vmatpush1.msra.mxu0 0.0
    %566 = vmatprep.subr.mxu0 0.0
    %567 = vmatpush1.msra.mxu0 0.0
    %568 = vmatprep.subr.mxu0 0.0
    %569 = vmatpush1.msra.mxu0 0.0
    %570 = vmatprep.subr.mxu0 0.0
    %571 = vmatpush1.msra.mxu0 0.0
    %572 = vmatprep.subr.mxu0 0.0
    %573 = vmatpush1.msra.mxu0 0.0
    %574 = vmatprep.subr.mxu0 0.0
    %575 = vmatpush1.msra.mxu0 0.0
    %576 = vmatprep.subr.mxu0 0.0
    %577 = vmatpush1.msra.mxu0 0.0
    %578 = vmatprep.subr.mxu0 0.0
    %579 = vmatpush1.msra.mxu0 0.0
    %580 = vmatprep.subr.mxu0 0.0
    %581 = vmatpush1.msra.mxu0 0.0
    %582 = vmatprep.subr.mxu0 0.0
    %583 = vmatpush1.msra.mxu0 0.0
    %584 = vmatprep.subr.mxu0 0.0
    %585 = vmatpush1.msra.mxu0 0.0
    %586 = vmatprep.subr.mxu0 0.0
    %587 = vmatpush1.msra.mxu0 0.0
    %588 = vmatprep.subr.mxu0 0.0
    %589 = vmatpush1.msra.mxu0 0.0
    %590 = vmatprep.subr.mxu0 0.0
    %591 = vmatpush1.msra.mxu0 0.0
    %592 = vmatprep.subr.mxu0 0.0
    %593 = vmatpush1.msra.mxu0 0.0
    %594 = vmatprep.subr.mxu0 0.0
    %595 = vmatpush1.msra.mxu0 0.0
    %596 = vmatprep.subr.mxu0 0.0
    %597 = vmatpush1.msra.mxu0 0.0
    %598 = vmatprep.subr.mxu0 0.0
    %599 = vmatpush1.msra.mxu0 0.0
    %600 = vmatprep.subr.mxu0 0.0
    %601 = vmatpush1.msra.mxu0 0.0
    %602 = vmatprep.subr.mxu0 0.0
    %603 = vmatpush1.msra.mxu0 0.0
    %604 = vmatprep.subr.mxu0 0.0
    %605 = vmatpush1.msra.mxu0 0.0
    %606 = vmatprep.subr.mxu0 0.0
    %607 = vmatpush1.msra.mxu0 0.0
    %608 = vmatprep.subr.mxu0 0.0
    %609 = vmatpush1.msra.mxu0 0.0
    %610 = vmatprep.mubr.f32.mxu0 0.0
    %611 = vmatmul.mubr.f32.gmra.mrb[0].mxu0 %v163
    %v612 = vpop.f32.mrb[0].mxu0
    %v613 = vadd.f32 %v159, %v612
    %v614 = vpop.f32.mrb[0].mxu0
    %615 = vmatprep.mubr.f32.mxu0 0.0
    %616 = vmatmul.mubr.f32.gmra.mrb[0].mxu0 %v166
    %v617 = vpop.f32.mrb[0].mxu0
    %v618 = vadd.f32 %v159, %v617
    %v619 = vpop.f32.mrb[0].mxu0
    %620 = vmatprep.mubr.f32.mxu0 0.0
    %621 = vmatmul.mubr.f32.gmra.mrb[0].mxu0 %v169
    %v622 = vpop.f32.mrb[0].mxu0
    %v623 = vadd.f32 %v159, %v622
    %v624 = vpop.f32.mrb[0].mxu0
    %625 = vmatprep.mubr.f32.mxu0 0.0
    %626 = vmatmul.mubr.f32.gmra.mrb[0].mxu0 %v172
    %v627 = vpop.f32.mrb[0].mxu0
    %v628 = vadd.f32 %v159, %v627
    %v629 = vpop.f32.mrb[0].mxu0
    %630 = vmatprep.mubr.f32.mxu0 0.0
    %631 = vmatmul.mubr.f32.gmra.mrb[0].mxu0 %v175
    %v632 = vpop.f32.mrb[0].mxu0
    %v633 = vadd.f32 %v159, %v632
    %v634 = vpop.f32.mrb[0].mxu0
    %635 = vmatprep.mubr.f32.mxu0 0.0
    %636 = vmatmul.mubr.f32.gmra.mrb[0].mxu0 %v178
    %v637 = vpop.f32.mrb[0].mxu0
    %v638 = vadd.f32 %v159, %v637
    %v639 = vpop.f32.mrb[0].mxu0
    %640 = vmatprep.mubr.f32.mxu0 0.0
    %641 = vmatmul.mubr.f32.gmra.mrb[0].mxu0 %v181
    %v642 = vpop.f32.mrb[0].mxu0
    %v643 = vadd.f32 %v159, %v642
    %v644 = vpop.f32.mrb[0].mxu0
    %645 = vmatprep.mubr.f32.mxu0 0.0
    %646 = vmatmul.mubr.f32.gmra.mrb[0].mxu0 %v184
    %v647 = vpop.f32.mrb[0].mxu0
    %v648 = vadd.f32 %v159, %v647
    %v649 = vpop.f32.mrb[0].mxu0
    %650 = vmatprep.mubr.f32.mxu0 0.0
    %651 = vmatmul.mubr.f32.gmra.mrb[0].mxu0 %v187
    %v652 = vpop.f32.mrb[0].mxu0
    %v653 = vadd.f32 %v159, %v652
    %v654 = vpop.f32.mrb[0].mxu0
    %655 = vmatprep.mubr.f32.mxu0 0.0
    %656 = vmatmul.mubr.f32.gmra.mrb[0].mxu0 %v190
    %v657 = vpop.f32.mrb[0].mxu0
    %v658 = vadd.f32 %v159, %v657
    %v659 = vpop.f32.mrb[0].mxu0
    %660 = vmatprep.mubr.f32.mxu0 0.0
    %661 = vmatmul.mubr.f32.gmra.mrb[0].mxu0 %v193
    %v662 = vpop.f32.mrb[0].mxu0
    %v663 = vadd.f32 %v159, %v662
    %v664 = vpop.f32.mrb[0].mxu0
    %665 = vmatprep.mubr.f32.mxu0 0.0
    %666 = vmatmul.mubr.f32.gmra.mrb[0].mxu0 %v196
    %v667 = vpop.f32.mrb[0].mxu0
    %v668 = vadd.f32 %v159, %v667
    %v669 = vpop.f32.mrb[0].mxu0
    %670 = vmatprep.mubr.f32.mxu0 0.0
    %671 = vmatmul.mubr.f32.gmra.mrb[0].mxu0 %v199
    %v672 = vpop.f32.mrb[0].mxu0
    %v673 = vadd.f32 %v159, %v672
    %v674 = vpop.f32.mrb[0].mxu0
    %675 = vmatprep.mubr.f32.mxu0 0.0
    %676 = vmatmul.mubr.f32.gmra.mrb[0].mxu0 %v202
    %v677 = vpop.f32.mrb[0].mxu0
    %v678 = vadd.f32 %v159, %v677
    %v679 = vpop.f32.mrb[0].mxu0
    %680 = vmatprep.mubr.f32.mxu0 0.0
    %681 = vmatmul.mubr.f32.gmra.mrb[0].mxu0 %v205
    %v682 = vpop.f32.mrb[0].mxu0
    %v683 = vadd.f32 %v159, %v682
    %v684 = vpop.f32.mrb[0].mxu0
    %685 = vmatprep.mubr.f32.mxu0 0.0
    %686 = vmatmul.mubr.f32.gmra.mrb[0].mxu0 %v208
    %v687 = vpop.f32.mrb[0].mxu0
    %v688 = vadd.f32 %v159, %v687
    %v689 = vpop.f32.mrb[0].mxu0
    %690 = vmatprep.mubr.f32.mxu0 0.0
    %691 = vmatmul.mubr.f32.gmra.mrb[0].mxu0 %v211
    %v692 = vpop.f32.mrb[0].mxu0
    %v693 = vadd.f32 %v159, %v692
    %v694 = vpop.f32.mrb[0].mxu0
    %695 = vmatprep.mubr.f32.mxu0 0.0
    %696 = vmatmul.mubr.f32.gmra.mrb[0].mxu0 %v214
    %v697 = vpop.f32.mrb[0].mxu0
    %v698 = vadd.f32 %v159, %v697
    %v699 = vpop.f32.mrb[0].mxu0
    %700 = vmatprep.mubr.f32.mxu0 0.0
    %701 = vmatmul.mubr.f32.gmra.mrb[0].mxu0 %v217
    %v702 = vpop.f32.mrb[0].mxu0
    %v703 = vadd.f32 %v159, %v702
    %v704 = vpop.f32.mrb[0].mxu0
    %705 = vmatprep.mubr.f32.mxu0 0.0
    %706 = vmatmul.mubr.f32.gmra.mrb[0].mxu0 %v220
    %v707 = vpop.f32.mrb[0].mxu0
    %v708 = vadd.f32 %v159, %v707
    %v709 = vpop.f32.mrb[0].mxu0
    %710 = vmatprep.mubr.f32.mxu0 0.0
    %711 = vmatmul.mubr.f32.gmra.mrb[0].mxu0 %v223
    %v712 = vpop.f32.mrb[0].mxu0
    %v713 = vadd.f32 %v159, %v712
    %v714 = vpop.f32.mrb[0].mxu0
    %715 = vmatprep.mubr.f32.mxu0 0.0
    %716 = vmatmul.mubr.f32.gmra.mrb[0].mxu0 %v226
    %v717 = vpop.f32.mrb[0].mxu0
    %v718 = vadd.f32 %v159, %v717
    %v719 = vpop.f32.mrb[0].mxu0
    %720 = vmatprep.mubr.f32.mxu0 0.0
    %721 = vmatmul.mubr.f32.gmra.mrb[0].mxu0 %v229
    %v722 = vpop.f32.mrb[0].mxu0
    %v723 = vadd.f32 %v159, %v722
    %v724 = vpop.f32.mrb[0].mxu0
    %725 = vmatprep.mubr.f32.mxu0 0.0
    %726 = vmatmul.mubr.f32.gmra.mrb[0].mxu0 %v232
    %v727 = vpop.f32.mrb[0].mxu0
    %v728 = vadd.f32 %v159, %v727
    %v729 = vpop.f32.mrb[0].mxu0
    %730 = vmatprep.mubr.f32.mxu0 0.0
    %731 = vmatmul.mubr.f32.gmra.mrb[0].mxu0 %v235
    %v732 = vpop.f32.mrb[0].mxu0
    %v733 = vadd.f32 %v159, %v732
    %v734 = vpop.f32.mrb[0].mxu0
    %735 = vmatprep.mubr.f32.mxu0 0.0
    %736 = vmatmul.mubr.f32.gmra.mrb[0].mxu0 %v238
    %v737 = vpop.f32.mrb[0].mxu0
    %v738 = vadd.f32 %v159, %v737
    %v739 = vpop.f32.mrb[0].mxu0
    %740 = vmatprep.mubr.f32.mxu0 0.0
    %741 = vmatmul.mubr.f32.gmra.mrb[0].mxu0 %v241
    %v742 = vpop.f32.mrb[0].mxu0
    %v743 = vadd.f32 %v159, %v742
    %v744 = vpop.f32.mrb[0].mxu0
    %745 = vmatprep.mubr.f32.mxu0 0.0
    %746 = vmatmul.mubr.f32.gmra.mrb[0].mxu0 %v244
    %v747 = vpop.f32.mrb[0].mxu0
    %v748 = vadd.f32 %v159, %v747
    %v749 = vpop.f32.mrb[0].mxu0
    %750 = vmatprep.mubr.f32.mxu0 0.0
    %751 = vmatmul.mubr.f32.gmra.mrb[0].mxu0 %v247
    %v752 = vpop.f32.mrb[0].mxu0
    %v753 = vadd.f32 %v159, %v752
    %v754 = vpop.f32.mrb[0].mxu0
    %755 = vmatprep.mubr.f32.mxu0 0.0
    %756 = vmatmul.mubr.f32.gmra.mrb[0].mxu0 %v250
    %v757 = vpop.f32.mrb[0].mxu0
    %v758 = vadd.f32 %v159, %v757
    %v759 = vpop.f32.mrb[0].mxu0
    %760 = vmatprep.mubr.f32.mxu0 0.0
    %761 = vmatmul.mubr.f32.gmra.mrb[0].mxu0 %v253
    %v762 = vpop.f32.mrb[0].mxu0
    %v763 = vadd.f32 %v159, %v762
    %v764 = vpop.f32.mrb[0].mxu0
    %765 = vmatprep.mubr.f32.mxu0 0.0
    %766 = vmatmul.mubr.f32.gmra.mrb[0].mxu0 %v256
    %v767 = vpop.f32.mrb[0].mxu0
    %v768 = vadd.f32 %v159, %v767
    %v769 = vpop.f32.mrb[0].mxu0
    %770 = vmatprep.mubr.f32.mxu0 0.0
    %771 = vmatmul.mubr.f32.gmra.mrb[0].mxu0 %v259
    %v772 = vpop.f32.mrb[0].mxu0
    %v773 = vadd.f32 %v159, %v772
    %v774 = vpop.f32.mrb[0].mxu0
    %775 = vmatprep.mubr.f32.mxu0 0.0
    %776 = vmatmul.mubr.f32.gmra.mrb[0].mxu0 %v262
    %v777 = vpop.f32.mrb[0].mxu0
    %v778 = vadd.f32 %v159, %v777
    %v779 = vpop.f32.mrb[0].mxu0
    %780 = vmatprep.mubr.f32.mxu0 0.0
    %781 = vmatmul.mubr.f32.gmra.mrb[0].mxu0 %v265
    %v782 = vpop.f32.mrb[0].mxu0
    %v783 = vadd.f32 %v159, %v782
    %v784 = vpop.f32.mrb[0].mxu0
    %785 = vmatprep.mubr.f32.mxu0 0.0
    %786 = vmatmul.mubr.f32.gmra.mrb[0].mxu0 %v268
    %v787 = vpop.f32.mrb[0].mxu0
    %v788 = vadd.f32 %v159, %v787
    %v789 = vpop.f32.mrb[0].mxu0
    %790 = vmatprep.mubr.f32.mxu0 0.0
    %791 = vmatmul.mubr.f32.gmra.mrb[0].mxu0 %v271
    %v792 = vpop.f32.mrb[0].mxu0
    %v793 = vadd.f32 %v159, %v792
    %v794 = vpop.f32.mrb[0].mxu0
    %795 = vmatprep.mubr.f32.mxu0 0.0
    %796 = vmatmul.mubr.f32.gmra.mrb[0].mxu0 %v274
    %v797 = vpop.f32.mrb[0].mxu0
    %v798 = vadd.f32 %v159, %v797
    %v799 = vpop.f32.mrb[0].mxu0
    %800 = vmatprep.mubr.f32.mxu0 0.0
    %801 = vmatmul.mubr.f32.gmra.mrb[0].mxu0 %v277
    %v802 = vpop.f32.mrb[0].mxu0
    %v803 = vadd.f32 %v159, %v802
    %v804 = vpop.f32.mrb[0].mxu0
    %805 = vmatprep.mubr.f32.mxu0 0.0
    %806 = vmatmul.mubr.f32.gmra.mrb[0].mxu0 %v280
    %v807 = vpop.f32.mrb[0].mxu0
    %v808 = vadd.f32 %v159, %v807
    %v809 = vpop.f32.mrb[0].mxu0
    %810 = vmatprep.mubr.f32.mxu0 0.0
    %811 = vmatmul.mubr.f32.gmra.mrb[0].mxu0 %v283
    %v812 = vpop.f32.mrb[0].mxu0
    %v813 = vadd.f32 %v159, %v812
    %v814 = vpop.f32.mrb[0].mxu0
    %815 = vmatprep.mubr.f32.mxu0 0.0
    %816 = vmatmul.mubr.f32.gmra.mrb[0].mxu0 %v286
    %v817 = vpop.f32.mrb[0].mxu0
    %v818 = vadd.f32 %v159, %v817
    %v819 = vpop.f32.mrb[0].mxu0
    %820 = vmatprep.mubr.f32.mxu0 0.0
    %821 = vmatmul.mubr.f32.gmra.mrb[0].mxu0 %v289
    %v822 = vpop.f32.mrb[0].mxu0
    %v823 = vadd.f32 %v159, %v822
    %v824 = vpop.f32.mrb[0].mxu0
    %825 = vmatprep.mubr.f32.mxu0 0.0
    %826 = vmatmul.mubr.f32.gmra.mrb[0].mxu0 %v292
    %v827 = vpop.f32.mrb[0].mxu0
    %v828 = vadd.f32 %v159, %v827
    %v829 = vpop.f32.mrb[0].mxu0
    %830 = vmatprep.mubr.f32.mxu0 0.0
    %831 = vmatmul.mubr.f32.gmra.mrb[0].mxu0 %v295
    %v832 = vpop.f32.mrb[0].mxu0
    %v833 = vadd.f32 %v159, %v832
    %v834 = vpop.f32.mrb[0].mxu0
    %835 = vmatprep.mubr.f32.mxu0 0.0
    %836 = vmatmul.mubr.f32.gmra.mrb[0].mxu0 %v298
    %v837 = vpop.f32.mrb[0].mxu0
    %v838 = vadd.f32 %v159, %v837
    %v839 = vpop.f32.mrb[0].mxu0
    %840 = vmatprep.mubr.f32.mxu0 0.0
    %841 = vmatmul.mubr.f32.gmra.mrb[0].mxu0 %v301
    %v842 = vpop.f32.mrb[0].mxu0
    %v843 = vadd.f32 %v159, %v842
    %v844 = vpop.f32.mrb[0].mxu0
    %845 = vmatprep.mubr.f32.mxu0 0.0
    %846 = vmatmul.mubr.f32.gmra.mrb[0].mxu0 %v304
    %v847 = vpop.f32.mrb[0].mxu0
    %v848 = vadd.f32 %v159, %v847
    %v849 = vpop.f32.mrb[0].mxu0
    %850 = vmatprep.mubr.f32.mxu0 0.0
    %851 = vmatmul.mubr.f32.gmra.mrb[0].mxu0 %v307
    %v852 = vpop.f32.mrb[0].mxu0
    %v853 = vadd.f32 %v159, %v852
    %v854 = vpop.f32.mrb[0].mxu0
    %855 = vmatprep.mubr.f32.mxu0 0.0
    %856 = vmatmul.mubr.f32.gmra.mrb[0].mxu0 %v310
    %v857 = vpop.f32.mrb[0].mxu0
    %v858 = vadd.f32 %v159, %v857
    %v859 = vpop.f32.mrb[0].mxu0
    %860 = vmatprep.mubr.f32.mxu0 0.0
    %861 = vmatmul.mubr.f32.gmra.mrb[0].mxu0 %v313
    %v862 = vpop.f32.mrb[0].mxu0
    %v863 = vadd.f32 %v159, %v862
    %v864 = vpop.f32.mrb[0].mxu0
    %865 = vmatprep.mubr.f32.mxu0 0.0
    %866 = vmatmul.mubr.f32.gmra.mrb[0].mxu0 %v316
    %v867 = vpop.f32.mrb[0].mxu0
    %v868 = vadd.f32 %v159, %v867
    %v869 = vpop.f32.mrb[0].mxu0
    %870 = vmatprep.mubr.f32.mxu0 0.0
    %871 = vmatmul.mubr.f32.gmra.mrb[0].mxu0 %v319
    %v872 = vpop.f32.mrb[0].mxu0
    %v873 = vadd.f32 %v159, %v872
    %v874 = vpop.f32.mrb[0].mxu0
    %875 = vmatprep.mubr.f32.mxu0 0.0
    %876 = vmatmul.mubr.f32.gmra.mrb[0].mxu0 %v322
    %v877 = vpop.f32.mrb[0].mxu0
    %v878 = vadd.f32 %v159, %v877
    %v879 = vpop.f32.mrb[0].mxu0
    %880 = vmatprep.mubr.f32.mxu0 0.0
    %881 = vmatmul.mubr.f32.gmra.mrb[0].mxu0 %v325
    %v882 = vpop.f32.mrb[0].mxu0
    %v883 = vadd.f32 %v159, %v882
    %v884 = vpop.f32.mrb[0].mxu0
    %885 = vmatprep.mubr.f32.mxu0 0.0
    %886 = vmatmul.mubr.f32.gmra.mrb[0].mxu0 %v328
    %v887 = vpop.f32.mrb[0].mxu0
    %v888 = vadd.f32 %v159, %v887
    %v889 = vpop.f32.mrb[0].mxu0
    %890 = vmatprep.mubr.f32.mxu0 0.0
    %891 = vmatmul.mubr.f32.gmra.mrb[0].mxu0 %v331
    %v892 = vpop.f32.mrb[0].mxu0
    %v893 = vadd.f32 %v159, %v892
    %v894 = vpop.f32.mrb[0].mxu0
    %895 = vmatprep.mubr.f32.mxu0 0.0
    %896 = vmatmul.mubr.f32.gmra.mrb[0].mxu0 %v334
    %v897 = vpop.f32.mrb[0].mxu0
    %v898 = vadd.f32 %v159, %v897
    %v899 = vpop.f32.mrb[0].mxu0
    %900 = vmatprep.mubr.f32.mxu0 0.0
    %901 = vmatmul.mubr.f32.gmra.mrb[0].mxu0 %v337
    %v902 = vpop.f32.mrb[0].mxu0
    %v903 = vadd.f32 %v159, %v902
    %v904 = vpop.f32.mrb[0].mxu0
    %905 = vmatprep.mubr.f32.mxu0 0.0
    %906 = vmatmul.mubr.f32.gmra.mrb[0].mxu0 %v340
    %v907 = vpop.f32.mrb[0].mxu0
    %v908 = vadd.f32 %v159, %v907
    %v909 = vpop.f32.mrb[0].mxu0
    %910 = vmatprep.mubr.f32.mxu0 0.0
    %911 = vmatmul.mubr.f32.gmra.mrb[0].mxu0 %v343
    %v912 = vpop.f32.mrb[0].mxu0
    %v913 = vadd.f32 %v159, %v912
    %v914 = vpop.f32.mrb[0].mxu0
    %915 = vmatprep.mubr.f32.mxu0 0.0
    %916 = vmatmul.mubr.f32.gmra.mrb[0].mxu0 %v346
    %v917 = vpop.f32.mrb[0].mxu0
    %v918 = vadd.f32 %v159, %v917
    %v919 = vpop.f32.mrb[0].mxu0
    %920 = vmatprep.mubr.f32.mxu0 0.0
    %921 = vmatmul.mubr.f32.gmra.mrb[0].mxu0 %v349
    %v922 = vpop.f32.mrb[0].mxu0
    %v923 = vadd.f32 %v159, %v922
    %v924 = vpop.f32.mrb[0].mxu0
    %925 = vmatprep.mubr.f32.mxu0 0.0
    %926 = vmatmul.mubr.f32.gmra.mrb[0].mxu0 %v352
    %v927 = vpop.f32.mrb[0].mxu0
    %v928 = vadd.f32 %v159, %v927
    %v929 = vpop.f32.mrb[0].mxu0
    %930 = vmatprep.mubr.f32.mxu0 0.0
    %931 = vmatmul.mubr.f32.gmra.mrb[0].mxu0 %v355
    %v932 = vpop.f32.mrb[0].mxu0
    %v933 = vadd.f32 %v159, %v932
    %v934 = vpop.f32.mrb[0].mxu0
    %935 = vmatprep.mubr.f32.mxu0 0.0
    %936 = vmatmul.mubr.f32.gmra.mrb[0].mxu0 %v358
    %v937 = vpop.f32.mrb[0].mxu0
    %v938 = vadd.f32 %v159, %v937
    %v939 = vpop.f32.mrb[0].mxu0
    %940 = vmatprep.mubr.f32.mxu0 0.0
    %941 = vmatmul.mubr.f32.gmra.mrb[0].mxu0 %v361
    %v942 = vpop.f32.mrb[0].mxu0
    %v943 = vadd.f32 %v159, %v942
    %v944 = vpop.f32.mrb[0].mxu0
    %945 = vmatprep.mubr.f32.mxu0 0.0
    %946 = vmatmul.mubr.f32.gmra.mrb[0].mxu0 %v364
    %v947 = vpop.f32.mrb[0].mxu0
    %v948 = vadd.f32 %v159, %v947
    %v949 = vpop.f32.mrb[0].mxu0
    %950 = vmatprep.mubr.f32.mxu0 0.0
    %951 = vmatmul.mubr.f32.gmra.mrb[0].mxu0 %v367
    %v952 = vpop.f32.mrb[0].mxu0
    %v953 = vadd.f32 %v159, %v952
    %v954 = vpop.f32.mrb[0].mxu0
    %955 = vmatprep.mubr.f32.mxu0 0.0
    %956 = vmatmul.mubr.f32.gmra.mrb[0].mxu0 %v370
    %v957 = vpop.f32.mrb[0].mxu0
    %v958 = vadd.f32 %v159, %v957
    %v959 = vpop.f32.mrb[0].mxu0
    %960 = vmatprep.mubr.f32.mxu0 0.0
    %961 = vmatmul.mubr.f32.gmra.mrb[0].mxu0 %v373
    %v962 = vpop.f32.mrb[0].mxu0
    %v963 = vadd.f32 %v159, %v962
    %v964 = vpop.f32.mrb[0].mxu0
    %965 = vmatprep.mubr.f32.mxu0 0.0
    %966 = vmatmul.mubr.f32.gmra.mrb[0].mxu0 %v376
    %v967 = vpop.f32.mrb[0].mxu0
    %v968 = vadd.f32 %v159, %v967
    %v969 = vpop.f32.mrb[0].mxu0
    %970 = vmatprep.mubr.f32.mxu0 0.0
    %971 = vmatmul.mubr.f32.gmra.mrb[0].mxu0 %v379
    %v972 = vpop.f32.mrb[0].mxu0
    %v973 = vadd.f32 %v159, %v972
    %v974 = vpop.f32.mrb[0].mxu0
    %975 = vmatprep.mubr.f32.mxu0 0.0
    %976 = vmatmul.mubr.f32.gmra.mrb[0].mxu0 %v382
    %v977 = vpop.f32.mrb[0].mxu0
    %v978 = vadd.f32 %v159, %v977
    %v979 = vpop.f32.mrb[0].mxu0
    %980 = vmatprep.mubr.f32.mxu0 0.0
    %981 = vmatmul.mubr.f32.gmra.mrb[0].mxu0 %v385
    %v982 = vpop.f32.mrb[0].mxu0
    %v983 = vadd.f32 %v159, %v982
    %v984 = vpop.f32.mrb[0].mxu0
    %985 = vmatprep.mubr.f32.mxu0 0.0
    %986 = vmatmul.mubr.f32.gmra.mrb[0].mxu0 %v388
    %v987 = vpop.f32.mrb[0].mxu0
    %v988 = vadd.f32 %v159, %v987
    %v989 = vpop.f32.mrb[0].mxu0
    %990 = vmatprep.mubr.f32.mxu0 0.0
    %991 = vmatmul.mubr.f32.gmra.mrb[0].mxu0 %v391
    %v992 = vpop.f32.mrb[0].mxu0
    %v993 = vadd.f32 %v159, %v992
    %v994 = vpop.f32.mrb[0].mxu0
    %995 = vmatprep.mubr.f32.mxu0 0.0
    %996 = vmatmul.mubr.f32.gmra.mrb[0].mxu0 %v394
    %v997 = vpop.f32.mrb[0].mxu0
    %v998 = vadd.f32 %v159, %v997
    %v999 = vpop.f32.mrb[0].mxu0
    %1000 = vmatprep.mubr.f32.mxu0 0.0
    %1001 = vmatmul.mubr.f32.gmra.mrb[0].mxu0 %v397
    %v1002 = vpop.f32.mrb[0].mxu0
    %v1003 = vadd.f32 %v159, %v1002
    %v1004 = vpop.f32.mrb[0].mxu0
    %1005 = vmatprep.mubr.f32.mxu0 0.0
    %1006 = vmatmul.mubr.f32.gmra.mrb[0].mxu0 %v400
    %v1007 = vpop.f32.mrb[0].mxu0
    %v1008 = vadd.f32 %v159, %v1007
    %v1009 = vpop.f32.mrb[0].mxu0
    %1010 = vmatprep.mubr.f32.mxu0 0.0
    %1011 = vmatmul.mubr.f32.gmra.mrb[0].mxu0 %v403
    %v1012 = vpop.f32.mrb[0].mxu0
    %v1013 = vadd.f32 %v159, %v1012
    %v1014 = vpop.f32.mrb[0].mxu0
    %1015 = vmatprep.mubr.f32.mxu0 0.0
    %1016 = vmatmul.mubr.f32.gmra.mrb[0].mxu0 %v406
    %v1017 = vpop.f32.mrb[0].mxu0
    %v1018 = vadd.f32 %v159, %v1017
    %v1019 = vpop.f32.mrb[0].mxu0
    %1020 = vmatprep.mubr.f32.mxu0 0.0
    %1021 = vmatmul.mubr.f32.gmra.mrb[0].mxu0 %v409
    %v1022 = vpop.f32.mrb[0].mxu0
    %v1023 = vadd.f32 %v159, %v1022
    %v1024 = vpop.f32.mrb[0].mxu0
    %1025 = vmatprep.mubr.f32.mxu0 0.0
    %1026 = vmatmul.mubr.f32.gmra.mrb[0].mxu0 %v412
    %v1027 = vpop.f32.mrb[0].mxu0
    %v1028 = vadd.f32 %v159, %v1027
    %v1029 = vpop.f32.mrb[0].mxu0
    %1030 = vmatprep.mubr.f32.mxu0 0.0
    %1031 = vmatmul.mubr.f32.gmra.mrb[0].mxu0 %v415
    %v1032 = vpop.f32.mrb[0].mxu0
    %v1033 = vadd.f32 %v159, %v1032
    %v1034 = vpop.f32.mrb[0].mxu0
    %1035 = vmatprep.mubr.f32.mxu0 0.0
    %1036 = vmatmul.mubr.f32.gmra.mrb[0].mxu0 %v418
    %v1037 = vpop.f32.mrb[0].mxu0
    %v1038 = vadd.f32 %v159, %v1037
    %v1039 = vpop.f32.mrb[0].mxu0
    %1040 = vmatprep.mubr.f32.mxu0 0.0
    %1041 = vmatmul.mubr.f32.gmra.mrb[0].mxu0 %v421
    %v1042 = vpop.f32.mrb[0].mxu0
    %v1043 = vadd.f32 %v159, %v1042
    %v1044 = vpop.f32.mrb[0].mxu0
    %1045 = vmatprep.mubr.f32.mxu0 0.0
    %1046 = vmatmul.mubr.f32.gmra.mrb[0].mxu0 %v424
    %v1047 = vpop.f32.mrb[0].mxu0
    %v1048 = vadd.f32 %v159, %v1047
    %v1049 = vpop.f32.mrb[0].mxu0
    %1050 = vmatprep.mubr.f32.mxu0 0.0
    %1051 = vmatmul.mubr.f32.gmra.mrb[0].mxu0 %v427
    %v1052 = vpop.f32.mrb[0].mxu0
    %v1053 = vadd.f32 %v159, %v1052
    %v1054 = vpop.f32.mrb[0].mxu0
    %1055 = vmatprep.mubr.f32.mxu0 0.0
    %1056 = vmatmul.mubr.f32.gmra.mrb[0].mxu0 %v430
    %v1057 = vpop.f32.mrb[0].mxu0
    %v1058 = vadd.f32 %v159, %v1057
    %v1059 = vpop.f32.mrb[0].mxu0
    %1060 = vmatprep.mubr.f32.mxu0 0.0
    %1061 = vmatmul.mubr.f32.gmra.mrb[0].mxu0 %v433
    %v1062 = vpop.f32.mrb[0].mxu0
    %v1063 = vadd.f32 %v159, %v1062
    %v1064 = vpop.f32.mrb[0].mxu0
    %1065 = vmatprep.mubr.f32.mxu0 0.0
    %1066 = vmatmul.mubr.f32.gmra.mrb[0].mxu0 %v436
    %v1067 = vpop.f32.mrb[0].mxu0
    %v1068 = vadd.f32 %v159, %v1067
    %v1069 = vpop.f32.mrb[0].mxu0
    %1070 = vmatprep.mubr.f32.mxu0 0.0
    %1071 = vmatmul.mubr.f32.gmra.mrb[0].mxu0 %v439
    %v1072 = vpop.f32.mrb[0].mxu0
    %v1073 = vadd.f32 %v159, %v1072
    %v1074 = vpop.f32.mrb[0].mxu0
    %1075 = vmatprep.mubr.f32.mxu0 0.0
    %1076 = vmatmul.mubr.f32.gmra.mrb[0].mxu0 %v442
    %v1077 = vpop.f32.mrb[0].mxu0
    %v1078 = vadd.f32 %v159, %v1077
    %v1079 = vpop.f32.mrb[0].mxu0
    %1080 = vmatprep.mubr.f32.mxu0 0.0
    %1081 = vmatmul.mubr.f32.gmra.mrb[0].mxu0 %v445
    %v1082 = vpop.f32.mrb[0].mxu0
    %v1083 = vadd.f32 %v159, %v1082
    %v1084 = vpop.f32.mrb[0].mxu0
    %1085 = vmatprep.mubr.f32.mxu0 0.0
    %1086 = vmatmul.mubr.f32.gmra.mrb[0].mxu0 %v448
    %v1087 = vpop.f32.mrb[0].mxu0
    %v1088 = vadd.f32 %v159, %v1087
    %v1089 = vpop.f32.mrb[0].mxu0
    %1090 = vmatprep.mubr.f32.mxu0 0.0
    %1091 = vmatmul.mubr.f32.gmra.mrb[0].mxu0 %v451
    %v1092 = vpop.f32.mrb[0].mxu0
    %v1093 = vadd.f32 %v159, %v1092
    %v1094 = vpop.f32.mrb[0].mxu0
    %1095 = vmatprep.mubr.f32.mxu0 0.0
    %1096 = vmatmul.mubr.f32.gmra.mrb[0].mxu0 %v454
    %v1097 = vpop.f32.mrb[0].mxu0
    %v1098 = vadd.f32 %v159, %v1097
    %v1099 = vpop.f32.mrb[0].mxu0
    %1100 = vmatprep.mubr.f32.mxu0 0.0
    %1101 = vmatmul.mubr.f32.gmra.mrb[0].mxu0 %v457
    %v1102 = vpop.f32.mrb[0].mxu0
    %v1103 = vadd.f32 %v159, %v1102
    %v1104 = vpop.f32.mrb[0].mxu0
    %1105 = vmatprep.mubr.f32.mxu0 0.0
    %1106 = vmatmul.mubr.f32.gmra.mrb[0].mxu0 %v460
    %v1107 = vpop.f32.mrb[0].mxu0
    %v1108 = vadd.f32 %v159, %v1107
    %v1109 = vpop.f32.mrb[0].mxu0
    %1110 = vmatprep.mubr.f32.mxu0 0.0
    %1111 = vmatmul.mubr.f32.gmra.mrb[0].mxu0 %v463
    %v1112 = vpop.f32.mrb[0].mxu0
    %v1113 = vadd.f32 %v159, %v1112
    %v1114 = vpop.f32.mrb[0].mxu0
    %1115 = vmatprep.mubr.f32.mxu0 0.0
    %1116 = vmatmul.mubr.f32.gmra.mrb[0].mxu0 %v466
    %v1117 = vpop.f32.mrb[0].mxu0
    %v1118 = vadd.f32 %v159, %v1117
    %v1119 = vpop.f32.mrb[0].mxu0
    %1120 = vmatprep.mubr.f32.mxu0 0.0
    %1121 = vmatmul.mubr.f32.gmra.mrb[0].mxu0 %v469
    %v1122 = vpop.f32.mrb[0].mxu0
    %v1123 = vadd.f32 %v159, %v1122
    %v1124 = vpop.f32.mrb[0].mxu0
    %1125 = vmatprep.mubr.f32.mxu0 0.0
    %1126 = vmatmul.mubr.f32.gmra.mrb[0].mxu0 %v472
    %v1127 = vpop.f32.mrb[0].mxu0
    %v1128 = vadd.f32 %v159, %v1127
    %v1129 = vpop.f32.mrb[0].mxu0
    %1130 = vmatprep.mubr.f32.mxu0 0.0
    %1131 = vmatmul.mubr.f32.gmra.mrb[0].mxu0 %v475
    %v1132 = vpop.f32.mrb[0].mxu0
    %v1133 = vadd.f32 %v159, %v1132
    %v1134 = vpop.f32.mrb[0].mxu0
    %1135 = vmatprep.mubr.f32.mxu0 0.0
    %1136 = vmatmul.mubr.f32.gmra.mrb[0].mxu0 %v478
    %v1137 = vpop.f32.mrb[0].mxu0
    %v1138 = vadd.f32 %v159, %v1137
    %v1139 = vpop.f32.mrb[0].mxu0
    %1140 = vmatprep.mubr.f32.mxu0 0.0
    %1141 = vmatmul.mubr.f32.gmra.mrb[0].mxu0 %v481
    %v1142 = vpop.f32.mrb[0].mxu0
    %v1143 = vadd.f32 %v159, %v1142
    %v1144 = vpop.f32.mrb[0].mxu0
    %1145 = vmatprep.mubr.f32.mxu0 0.0
    %1146 = vmatmul.mubr.f32.gmra.mrb[0].mxu0 %v484
    %v1147 = vpop.f32.mrb[0].mxu0
    %v1148 = vadd.f32 %v159, %v1147
    %v1149 = vpop.f32.mrb[0].mxu0
    %1150 = vmatprep.mubr.f32.mxu0 0.0
    %1151 = vmatmul.mubr.f32.gmra.mrb[0].mxu0 %v487
    %v1152 = vpop.f32.mrb[0].mxu0
    %v1153 = vadd.f32 %v159, %v1152
    %v1154 = vpop.f32.mrb[0].mxu0
    %1155 = vmatprep.mubr.f32.mxu0 0.0
    %1156 = vmatmul.mubr.f32.gmra.mrb[0].mxu0 %v490
    %v1157 = vpop.f32.mrb[0].mxu0
    %v1158 = vadd.f32 %v159, %v1157
    %v1159 = vpop.f32.mrb[0].mxu0
    %1160 = vmatprep.mubr.f32.mxu0 0.0
    %1161 = vmatmul.mubr.f32.gmra.mrb[0].mxu0 %v493
    %v1162 = vpop.f32.mrb[0].mxu0
    %v1163 = vadd.f32 %v159, %v1162
    %v1164 = vpop.f32.mrb[0].mxu0
    %1165 = vmatprep.mubr.f32.mxu0 0.0
    %1166 = vmatmul.mubr.f32.gmra.mrb[0].mxu0 %v496
    %v1167 = vpop.f32.mrb[0].mxu0
    %v1168 = vadd.f32 %v159, %v1167
    %v1169 = vpop.f32.mrb[0].mxu0
    %1170 = vmatprep.mubr.f32.mxu0 0.0
    %1171 = vmatmul.mubr.f32.gmra.mrb[0].mxu0 %v499
    %v1172 = vpop.f32.mrb[0].mxu0
    %v1173 = vadd.f32 %v159, %v1172
    %v1174 = vpop.f32.mrb[0].mxu0
    %1175 = vmatprep.mubr.f32.mxu0 0.0
    %1176 = vmatmul.mubr.f32.gmra.mrb[0].mxu0 %v502
    %v1177 = vpop.f32.mrb[0].mxu0
    %v1178 = vadd.f32 %v159, %v1177
    %v1179 = vpop.f32.mrb[0].mxu0
    %1180 = vmatprep.mubr.f32.mxu0 0.0
    %1181 = vmatmul.mubr.f32.gmra.mrb[0].mxu0 %v505
    %v1182 = vpop.f32.mrb[0].mxu0
    %v1183 = vadd.f32 %v159, %v1182
    %v1184 = vpop.f32.mrb[0].mxu0
    %1185 = vmatprep.mubr.f32.mxu0 0.0
    %1186 = vmatmul.mubr.f32.gmra.mrb[0].mxu0 %v508
    %v1187 = vpop.f32.mrb[0].mxu0
    %v1188 = vadd.f32 %v159, %v1187
    %v1189 = vpop.f32.mrb[0].mxu0
    %1190 = vmatprep.mubr.f32.mxu0 0.0
    %1191 = vmatmul.mubr.f32.gmra.mrb[0].mxu0 %v511
    %v1192 = vpop.f32.mrb[0].mxu0
    %v1193 = vadd.f32 %v159, %v1192
    %v1194 = vpop.f32.mrb[0].mxu0
    %1195 = vmatprep.mubr.f32.mxu0 0.0
    %1196 = vmatmul.mubr.f32.gmra.mrb[0].mxu0 %v514
    %v1197 = vpop.f32.mrb[0].mxu0
    %v1198 = vadd.f32 %v159, %v1197
    %v1199 = vpop.f32.mrb[0].mxu0
    %1200 = vmatprep.mubr.f32.mxu0 0.0
    %1201 = vmatmul.mubr.f32.gmra.mrb[0].mxu0 %v517
    %v1202 = vpop.f32.mrb[0].mxu0
    %v1203 = vadd.f32 %v159, %v1202
    %v1204 = vpop.f32.mrb[0].mxu0
    %1205 = vmatprep.mubr.f32.mxu0 0.0
    %1206 = vmatmul.mubr.f32.gmra.mrb[0].mxu0 %v520
    %v1207 = vpop.f32.mrb[0].mxu0
    %v1208 = vadd.f32 %v159, %v1207
    %v1209 = vpop.f32.mrb[0].mxu0
    %1210 = vmatprep.mubr.f32.mxu0 0.0
    %1211 = vmatmul.mubr.f32.gmra.mrb[0].mxu0 %v523
    %v1212 = vpop.f32.mrb[0].mxu0
    %v1213 = vadd.f32 %v159, %v1212
    %v1214 = vpop.f32.mrb[0].mxu0
    %1215 = vmatprep.mubr.f32.mxu0 0.0
    %1216 = vmatmul.mubr.f32.gmra.mrb[0].mxu0 %v526
    %v1217 = vpop.f32.mrb[0].mxu0
    %v1218 = vadd.f32 %v159, %v1217
    %v1219 = vpop.f32.mrb[0].mxu0
    %1220 = vmatprep.mubr.f32.mxu0 0.0
    %1221 = vmatmul.mubr.f32.gmra.mrb[0].mxu0 %v529
    %v1222 = vpop.f32.mrb[0].mxu0
    %v1223 = vadd.f32 %v159, %v1222
    %v1224 = vpop.f32.mrb[0].mxu0
    %1225 = vmatprep.mubr.f32.mxu0 0.0
    %1226 = vmatmul.mubr.f32.gmra.mrb[0].mxu0 %v532
    %v1227 = vpop.f32.mrb[0].mxu0
    %v1228 = vadd.f32 %v159, %v1227
    %v1229 = vpop.f32.mrb[0].mxu0
    %1230 = vmatprep.mubr.f32.mxu0 0.0
    %1231 = vmatmul.mubr.f32.gmra.mrb[0].mxu0 %v535
    %v1232 = vpop.f32.mrb[0].mxu0
    %v1233 = vadd.f32 %v159, %v1232
    %v1234 = vpop.f32.mrb[0].mxu0
    %1235 = vmatprep.mubr.f32.mxu0 0.0
    %1236 = vmatmul.mubr.f32.gmra.mrb[0].mxu0 %v538
    %v1237 = vpop.f32.mrb[0].mxu0
    %v1238 = vadd.f32 %v159, %v1237
    %v1239 = vpop.f32.mrb[0].mxu0
    %1240 = vmatprep.mubr.f32.mxu0 0.0
    %1241 = vmatmul.mubr.f32.gmra.mrb[0].mxu0 %v541
    %v1242 = vpop.f32.mrb[0].mxu0
    %v1243 = vadd.f32 %v159, %v1242
    %v1244 = vpop.f32.mrb[0].mxu0
    %1245 = vmatprep.mubr.f32.mxu0 0.0
    %1246 = vmatmul.mubr.f32.gmra.mrb[0].mxu0 %v544
    %v1247 = vpop.f32.mrb[0].mxu0
    %v1248 = vadd.f32 %v159, %v1247
    %v1249 = vpop.f32.mrb[0].mxu0
    %1250 = vdwg.mxu0
    %v1251 = vtanh.pop %v613
    %v1252 = vtanh.pop %v618
    %v1253 = vtanh.pop %v623
    %v1254 = vtanh.pop %v628
    %v1255 = vtanh.pop %v633
    %v1256 = vtanh.pop %v638
    %v1257 = vtanh.pop %v643
    %v1258 = vtanh.pop %v648
    %v1259 = vtanh.pop %v653
    %v1260 = vtanh.pop %v658
    %v1261 = vtanh.pop %v663
    %v1262 = vtanh.pop %v668
    %v1263 = vtanh.pop %v673
    %v1264 = vtanh.pop %v678
    %v1265 = vtanh.pop %v683
    %v1266 = vtanh.pop %v688
    %v1267 = vtanh.pop %v693
    %v1268 = vtanh.pop %v698
    %v1269 = vtanh.pop %v703
    %v1270 = vtanh.pop %v708
    %v1271 = vtanh.pop %v713
    %v1272 = vtanh.pop %v718
    %v1273 = vtanh.pop %v723
    %v1274 = vtanh.pop %v728
    %v1275 = vtanh.pop %v733
    %v1276 = vtanh.pop %v738
    %v1277 = vtanh.pop %v743
    %v1278 = vtanh.pop %v748
    %v1279 = vtanh.pop %v753
    %v1280 = vtanh.pop %v758
    %v1281 = vtanh.pop %v763
    %v1282 = vtanh.pop %v768
    %v1283 = vtanh.pop %v773
    %v1284 = vtanh.pop %v778
    %v1285 = vtanh.pop %v783
    %v1286 = vtanh.pop %v788
    %v1287 = vtanh.pop %v793
    %v1288 = vtanh.pop %v798
    %v1289 = vtanh.pop %v803
    %v1290 = vtanh.pop %v808
    %v1291 = vtanh.pop %v813
    %v1292 = vtanh.pop %v818
    %v1293 = vtanh.pop %v823
    %v1294 = vtanh.pop %v828
    %v1295 = vtanh.pop %v833
    %v1296 = vtanh.pop %v838
    %v1297 = vtanh.pop %v843
    %v1298 = vtanh.pop %v848
    %v1299 = vtanh.pop %v853
    %v1300 = vtanh.pop %v858
    %v1301 = vtanh.pop %v863
    %v1302 = vtanh.pop %v868
    %v1303 = vtanh.pop %v873
    %v1304 = vtanh.pop %v878
    %v1305 = vtanh.pop %v883
    %v1306 = vtanh.pop %v888
    %v1307 = vtanh.pop %v893
    %v1308 = vtanh.pop %v898
    %v1309 = vtanh.pop %v903
    %v1310 = vtanh.pop %v908
    %v1311 = vtanh.pop %v913
    %v1312 = vtanh.pop %v918
    %v1313 = vtanh.pop %v923
    %v1314 = vtanh.pop %v928
    %v1315 = vtanh.pop %v933
    %v1316 = vtanh.pop %v938
    %v1317 = vtanh.pop %v943
    %v1318 = vtanh.pop %v948
    %v1319 = vtanh.pop %v953
    %v1320 = vtanh.pop %v958
    %v1321 = vtanh.pop %v963
    %v1322 = vtanh.pop %v968
    %v1323 = vtanh.pop %v973
    %v1324 = vtanh.pop %v978
    %v1325 = vtanh.pop %v983
    %v1326 = vtanh.pop %v988
    %v1327 = vtanh.pop %v993
    %v1328 = vtanh.pop %v998
    %v1329 = vtanh.pop %v1003
    %v1330 = vtanh.pop %v1008
    %v1331 = vtanh.pop %v1013
    %v1332 = vtanh.pop %v1018
    %v1333 = vtanh.pop %v1023
    %v1334 = vtanh.pop %v1028
    %v1335 = vtanh.pop %v1033
    %v1336 = vtanh.pop %v1038
    %v1337 = vtanh.pop %v1043
    %v1338 = vtanh.pop %v1048
    %v1339 = vtanh.pop %v1053
    %v1340 = vtanh.pop %v1058
    %v1341 = vtanh.pop %v1063
    %v1342 = vtanh.pop %v1068
    %v1343 = vtanh.pop %v1073
    %v1344 = vtanh.pop %v1078
    %v1345 = vtanh.pop %v1083
    %v1346 = vtanh.pop %v1088
    %v1347 = vtanh.pop %v1093
    %v1348 = vtanh.pop %v1098
    %v1349 = vtanh.pop %v1103
    %v1350 = vtanh.pop %v1108
    %v1351 = vtanh.pop %v1113
    %v1352 = vtanh.pop %v1118
    %v1353 = vtanh.pop %v1123
    %v1354 = vtanh.pop %v1128
    %v1355 = vtanh.pop %v1133
    %v1356 = vtanh.pop %v1138
    %v1357 = vtanh.pop %v1143
    %v1358 = vtanh.pop %v1148
    %v1359 = vtanh.pop %v1153
    %v1360 = vtanh.pop %v1158
    %v1361 = vtanh.pop %v1163
    %v1362 = vtanh.pop %v1168
    %v1363 = vtanh.pop %v1173
    %v1364 = vtanh.pop %v1178
    %v1365 = vtanh.pop %v1183
    %v1366 = vtanh.pop %v1188
    %v1367 = vtanh.pop %v1193
    %v1368 = vtanh.pop %v1198
    %v1369 = vtanh.pop %v1203
    %v1370 = vtanh.pop %v1208
    %v1371 = vtanh.pop %v1213
    %v1372 = vtanh.pop %v1218
    %v1373 = vtanh.pop %v1223
    %v1374 = vtanh.pop %v1228
    %v1375 = vtanh.pop %v1233
    %v1376 = vtanh.pop %v1238
    %v1377 = vtanh.pop %v1243
    %v1378 = vtanh.pop %v1248
    %v1379 = vld [vmem:[%s3] sm:$0xff]
    %v1380 = vld [vmem:[%s3 + $0x8] sm:$0xff]
    %v1381 = vld [vmem:[%s3 + $0x10] sm:$0xff]
    %v1382 = vld [vmem:[%s3 + $0x18] sm:$0xff]
    %v1384 = vsel %vm161, %v1251, 0
    %v1387 = vsel %vm161, %v1252, 0
    %v1390 = vsel %vm161, %v1253, 0
    %v1393 = vsel %vm161, %v1254, 0
    %v1396 = vsel %vm161, %v1255, 0
    %v1399 = vsel %vm161, %v1256, 0
    %v1402 = vsel %vm161, %v1257, 0
    %v1405 = vsel %vm161, %v1258, 0
    %v1408 = vsel %vm161, %v1259, 0
    %v1411 = vsel %vm161, %v1260, 0
    %v1414 = vsel %vm161, %v1261, 0
    %v1417 = vsel %vm161, %v1262, 0
    %v1420 = vsel %vm161, %v1263, 0
    %v1423 = vsel %vm161, %v1264, 0
    %v1426 = vsel %vm161, %v1265, 0
    %v1429 = vsel %vm161, %v1266, 0
    %v1432 = vsel %vm161, %v1267, 0
    %v1435 = vsel %vm161, %v1268, 0
    %v1438 = vsel %vm161, %v1269, 0
    %v1441 = vsel %vm161, %v1270, 0
    %v1444 = vsel %vm161, %v1271, 0
    %v1447 = vsel %vm161, %v1272, 0
    %v1450 = vsel %vm161, %v1273, 0
    %v1453 = vsel %vm161, %v1274, 0
    %v1456 = vsel %vm161, %v1275, 0
    %v1459 = vsel %vm161, %v1276, 0
    %v1462 = vsel %vm161, %v1277, 0
    %v1465 = vsel %vm161, %v1278, 0
    %v1468 = vsel %vm161, %v1279, 0
    %v1471 = vsel %vm161, %v1280, 0
    %v1474 = vsel %vm161, %v1281, 0
    %v1477 = vsel %vm161, %v1282, 0
    %v1480 = vsel %vm161, %v1283, 0
    %v1483 = vsel %vm161, %v1284, 0
    %v1486 = vsel %vm161, %v1285, 0
    %v1489 = vsel %vm161, %v1286, 0
    %v1492 = vsel %vm161, %v1287, 0
    %v1495 = vsel %vm161, %v1288, 0
    %v1498 = vsel %vm161, %v1289, 0
    %v1501 = vsel %vm161, %v1290, 0
    %v1504 = vsel %vm161, %v1291, 0
    %v1507 = vsel %vm161, %v1292, 0
    %v1510 = vsel %vm161, %v1293, 0
    %v1513 = vsel %vm161, %v1294, 0
    %v1516 = vsel %vm161, %v1295, 0
    %v1519 = vsel %vm161, %v1296, 0
    %v1522 = vsel %vm161, %v1297, 0
    %v1525 = vsel %vm161, %v1298, 0
    %v1528 = vsel %vm161, %v1299, 0
    %v1531 = vsel %vm161, %v1300, 0
    %v1534 = vsel %vm161, %v1301, 0
    %v1537 = vsel %vm161, %v1302, 0
    %v1540 = vsel %vm161, %v1303, 0
    %v1543 = vsel %vm161, %v1304, 0
    %v1546 = vsel %vm161, %v1305, 0
    %v1549 = vsel %vm161, %v1306, 0
    %v1552 = vsel %vm161, %v1307, 0
    %v1555 = vsel %vm161, %v1308, 0
    %v1558 = vsel %vm161, %v1309, 0
    %v1561 = vsel %vm161, %v1310, 0
    %v1564 = vsel %vm161, %v1311, 0
    %v1567 = vsel %vm161, %v1312, 0
    %v1570 = vsel %vm161, %v1313, 0
    %v1573 = vsel %vm161, %v1314, 0
    %v1576 = vsel %vm161, %v1315, 0
    %v1579 = vsel %vm161, %v1316, 0
    %v1582 = vsel %vm161, %v1317, 0
    %v1585 = vsel %vm161, %v1318, 0
    %v1588 = vsel %vm161, %v1319, 0
    %v1591 = vsel %vm161, %v1320, 0
    %v1594 = vsel %vm161, %v1321, 0
    %v1597 = vsel %vm161, %v1322, 0
    %v1600 = vsel %vm161, %v1323, 0
    %v1603 = vsel %vm161, %v1324, 0
    %v1606 = vsel %vm161, %v1325, 0
    %v1609 = vsel %vm161, %v1326, 0
    %v1612 = vsel %vm161, %v1327, 0
    %v1615 = vsel %vm161, %v1328, 0
    %v1618 = vsel %vm161, %v1329, 0
    %v1621 = vsel %vm161, %v1330, 0
    %v1624 = vsel %vm161, %v1331, 0
    %v1627 = vsel %vm161, %v1332, 0
    %v1630 = vsel %vm161, %v1333, 0
    %v1633 = vsel %vm161, %v1334, 0
    %v1636 = vsel %vm161, %v1335, 0
    %v1639 = vsel %vm161, %v1336, 0
    %v1642 = vsel %vm161, %v1337, 0
    %v1645 = vsel %vm161, %v1338, 0
    %v1648 = vsel %vm161, %v1339, 0
    %v1651 = vsel %vm161, %v1340, 0
    %v1654 = vsel %vm161, %v1341, 0
    %v1657 = vsel %vm161, %v1342, 0
    %v1660 = vsel %vm161, %v1343, 0
    %v1663 = vsel %vm161, %v1344, 0
    %v1666 = vsel %vm161, %v1345, 0
    %v1669 = vsel %vm161, %v1346, 0
    %v1672 = vsel %vm161, %v1347, 0
    %v1675 = vsel %vm161, %v1348, 0
    %v1678 = vsel %vm161, %v1349, 0
    %v1681 = vsel %vm161, %v1350, 0
    %v1684 = vsel %vm161, %v1351, 0
    %v1687 = vsel %vm161, %v1352, 0
    %v1690 = vsel %vm161, %v1353, 0
    %v1693 = vsel %vm161, %v1354, 0
    %v1696 = vsel %vm161, %v1355, 0
    %v1699 = vsel %vm161, %v1356, 0
    %v1702 = vsel %vm161, %v1357, 0
    %v1705 = vsel %vm161, %v1358, 0
    %v1708 = vsel %vm161, %v1359, 0
    %v1711 = vsel %vm161, %v1360, 0
    %v1714 = vsel %vm161, %v1361, 0
    %v1717 = vsel %vm161, %v1362, 0
    %v1720 = vsel %vm161, %v1363, 0
    %v1723 = vsel %vm161, %v1364, 0
    %v1726 = vsel %vm161, %v1365, 0
    %v1729 = vsel %vm161, %v1366, 0
    %v1732 = vsel %vm161, %v1367, 0
    %v1735 = vsel %vm161, %v1368, 0
    %v1738 = vsel %vm161, %v1369, 0
    %v1741 = vsel %vm161, %v1370, 0
    %v1744 = vsel %vm161, %v1371, 0
    %v1747 = vsel %vm161, %v1372, 0
    %v1750 = vsel %vm161, %v1373, 0
    %v1753 = vsel %vm161, %v1374, 0
    %v1756 = vsel %vm161, %v1375, 0
    %v1759 = vsel %vm161, %v1376, 0
    %v1762 = vsel %vm161, %v1377, 0
    %v1765 = vsel %vm161, %v1378, 0
    %1767 = vmatprep.subr.mxu0 0.0
    %1768 = vmatpush1.msra.mxu0 %v1379
    %1769 = vmatprep.subr.mxu0 0.0
    %1770 = vmatpush1.msra.mxu0 %v1380
    %1771 = vmatprep.subr.mxu0 0.0
    %1772 = vmatpush1.msra.mxu0 %v1381
    %1773 = vmatprep.subr.mxu0 0.0
    %1774 = vmatpush1.msra.mxu0 %v1382
    %1775 = vmatprep.subr.mxu0 0.0
    %1776 = vmatpush1.msra.mxu0 0.0
    %1777 = vmatprep.subr.mxu0 0.0
    %1778 = vmatpush1.msra.mxu0 0.0
    %1779 = vmatprep.subr.mxu0 0.0
    %1780 = vmatpush1.msra.mxu0 0.0
    %1781 = vmatprep.subr.mxu0 0.0
    %1782 = vmatpush1.msra.mxu0 0.0
    %1783 = vmatprep.subr.mxu0 0.0
    %1784 = vmatpush1.msra.mxu0 0.0
    %1785 = vmatprep.subr.mxu0 0.0
    %1786 = vmatpush1.msra.mxu0 0.0
    %1787 = vmatprep.subr.mxu0 0.0
    %1788 = vmatpush1.msra.mxu0 0.0
    %1789 = vmatprep.subr.mxu0 0.0
    %1790 = vmatpush1.msra.mxu0 0.0
    %1791 = vmatprep.subr.mxu0 0.0
    %1792 = vmatpush1.msra.mxu0 0.0
    %1793 = vmatprep.subr.mxu0 0.0
    %1794 = vmatpush1.msra.mxu0 0.0
    %1795 = vmatprep.subr.mxu0 0.0
    %1796 = vmatpush1.msra.mxu0 0.0
    %1797 = vmatprep.subr.mxu0 0.0
    %1798 = vmatpush1.msra.mxu0 0.0
    %1799 = vmatprep.subr.mxu0 0.0
    %1800 = vmatpush1.msra.mxu0 0.0
    %1801 = vmatprep.subr.mxu0 0.0
    %1802 = vmatpush1.msra.mxu0 0.0
    %1803 = vmatprep.subr.mxu0 0.0
    %1804 = vmatpush1.msra.mxu0 0.0
    %1805 = vmatprep.subr.mxu0 0.0
    %1806 = vmatpush1.msra.mxu0 0.0
    %1807 = vmatprep.subr.mxu0 0.0
    %1808 = vmatpush1.msra.mxu0 0.0
    %1809 = vmatprep.subr.mxu0 0.0
    %1810 = vmatpush1.msra.mxu0 0.0
    %1811 = vmatprep.subr.mxu0 0.0
    %1812 = vmatpush1.msra.mxu0 0.0
    %1813 = vmatprep.subr.mxu0 0.0
    %1814 = vmatpush1.msra.mxu0 0.0
    %1815 = vmatprep.subr.mxu0 0.0
    %1816 = vmatpush1.msra.mxu0 0.0
    %1817 = vmatprep.subr.mxu0 0.0
    %1818 = vmatpush1.msra.mxu0 0.0
    %1819 = vmatprep.subr.mxu0 0.0
    %1820 = vmatpush1.msra.mxu0 0.0
    %1821 = vmatprep.subr.mxu0 0.0
    %1822 = vmatpush1.msra.mxu0 0.0
    %1823 = vmatprep.subr.mxu0 0.0
    %1824 = vmatpush1.msra.mxu0 0.0
    %1825 = vmatprep.subr.mxu0 0.0
    %1826 = vmatpush1.msra.mxu0 0.0
    %1827 = vmatprep.subr.mxu0 0.0
    %1828 = vmatpush1.msra.mxu0 0.0
    %1829 = vmatprep.subr.mxu0 0.0
    %1830 = vmatpush1.msra.mxu0 0.0
    %1831 = vmatprep.mubr.f32.mxu0 0.0
    %1832 = vmatmul.mubr.f32.gmra.mrb[0].mxu0 %v1384
    %v1833 = vpop.f32.mrb[0].mxu0
    %v1834 = vadd.f32 0.0, %v1833
    %v1835 = vpop.f32.mrb[0].mxu0
    %1836 = vmatprep.mubr.f32.mxu0 0.0
    %1837 = vmatmul.mubr.f32.gmra.mrb[0].mxu0 %v1387
    %v1838 = vpop.f32.mrb[0].mxu0
    %v1839 = vadd.f32 0.0, %v1838
    %v1840 = vpop.f32.mrb[0].mxu0
    %1841 = vmatprep.mubr.f32.mxu0 0.0
    %1842 = vmatmul.mubr.f32.gmra.mrb[0].mxu0 %v1390
    %v1843 = vpop.f32.mrb[0].mxu0
    %v1844 = vadd.f32 0.0, %v1843
    %v1845 = vpop.f32.mrb[0].mxu0
    %1846 = vmatprep.mubr.f32.mxu0 0.0
    %1847 = vmatmul.mubr.f32.gmra.mrb[0].mxu0 %v1393
    %v1848 = vpop.f32.mrb[0].mxu0
    %v1849 = vadd.f32 0.0, %v1848
    %v1850 = vpop.f32.mrb[0].mxu0
    %1851 = vmatprep.mubr.f32.mxu0 0.0
    %1852 = vmatmul.mubr.f32.gmra.mrb[0].mxu0 %v1396
    %v1853 = vpop.f32.mrb[0].mxu0
    %v1854 = vadd.f32 0.0, %v1853
    %v1855 = vpop.f32.mrb[0].mxu0
    %1856 = vmatprep.mubr.f32.mxu0 0.0
    %1857 = vmatmul.mubr.f32.gmra.mrb[0].mxu0 %v1399
    %v1858 = vpop.f32.mrb[0].mxu0
    %v1859 = vadd.f32 0.0, %v1858
    %v1860 = vpop.f32.mrb[0].mxu0
    %1861 = vmatprep.mubr.f32.mxu0 0.0
    %1862 = vmatmul.mubr.f32.gmra.mrb[0].mxu0 %v1402
    %v1863 = vpop.f32.mrb[0].mxu0
    %v1864 = vadd.f32 0.0, %v1863
    %v1865 = vpop.f32.mrb[0].mxu0
    %1866 = vmatprep.mubr.f32.mxu0 0.0
    %1867 = vmatmul.mubr.f32.gmra.mrb[0].mxu0 %v1405
    %v1868 = vpop.f32.mrb[0].mxu0
    %v1869 = vadd.f32 0.0, %v1868
    %v1870 = vpop.f32.mrb[0].mxu0
    %1871 = vmatprep.mubr.f32.mxu0 0.0
    %1872 = vmatmul.mubr.f32.gmra.mrb[0].mxu0 %v1408
    %v1873 = vpop.f32.mrb[0].mxu0
    %v1874 = vadd.f32 0.0, %v1873
    %v1875 = vpop.f32.mrb[0].mxu0
    %1876 = vmatprep.mubr.f32.mxu0 0.0
    %1877 = vmatmul.mubr.f32.gmra.mrb[0].mxu0 %v1411
    %v1878 = vpop.f32.mrb[0].mxu0
    %v1879 = vadd.f32 0.0, %v1878
    %v1880 = vpop.f32.mrb[0].mxu0
    %1881 = vmatprep.mubr.f32.mxu0 0.0
    %1882 = vmatmul.mubr.f32.gmra.mrb[0].mxu0 %v1414
    %v1883 = vpop.f32.mrb[0].mxu0
    %v1884 = vadd.f32 0.0, %v1883
    %v1885 = vpop.f32.mrb[0].mxu0
    %1886 = vmatprep.mubr.f32.mxu0 0.0
    %1887 = vmatmul.mubr.f32.gmra.mrb[0].mxu0 %v1417
    %v1888 = vpop.f32.mrb[0].mxu0
    %v1889 = vadd.f32 0.0, %v1888
    %v1890 = vpop.f32.mrb[0].mxu0
    %1891 = vmatprep.mubr.f32.mxu0 0.0
    %1892 = vmatmul.mubr.f32.gmra.mrb[0].mxu0 %v1420
    %v1893 = vpop.f32.mrb[0].mxu0
    %v1894 = vadd.f32 0.0, %v1893
    %v1895 = vpop.f32.mrb[0].mxu0
    %1896 = vmatprep.mubr.f32.mxu0 0.0
    %1897 = vmatmul.mubr.f32.gmra.mrb[0].mxu0 %v1423
    %v1898 = vpop.f32.mrb[0].mxu0
    %v1899 = vadd.f32 0.0, %v1898
    %v1900 = vpop.f32.mrb[0].mxu0
    %1901 = vmatprep.mubr.f32.mxu0 0.0
    %1902 = vmatmul.mubr.f32.gmra.mrb[0].mxu0 %v1426
    %v1903 = vpop.f32.mrb[0].mxu0
    %v1904 = vadd.f32 0.0, %v1903
    %v1905 = vpop.f32.mrb[0].mxu0
    %1906 = vmatprep.mubr.f32.mxu0 0.0
    %1907 = vmatmul.mubr.f32.gmra.mrb[0].mxu0 %v1429
    %v1908 = vpop.f32.mrb[0].mxu0
    %v1909 = vadd.f32 0.0, %v1908
    %v1910 = vpop.f32.mrb[0].mxu0
    %1911 = vmatprep.mubr.f32.mxu0 0.0
    %1912 = vmatmul.mubr.f32.gmra.mrb[0].mxu0 %v1432
    %v1913 = vpop.f32.mrb[0].mxu0
    %v1914 = vadd.f32 0.0, %v1913
    %v1915 = vpop.f32.mrb[0].mxu0
    %1916 = vmatprep.mubr.f32.mxu0 0.0
    %1917 = vmatmul.mubr.f32.gmra.mrb[0].mxu0 %v1435
    %v1918 = vpop.f32.mrb[0].mxu0
    %v1919 = vadd.f32 0.0, %v1918
    %v1920 = vpop.f32.mrb[0].mxu0
    %1921 = vmatprep.mubr.f32.mxu0 0.0
    %1922 = vmatmul.mubr.f32.gmra.mrb[0].mxu0 %v1438
    %v1923 = vpop.f32.mrb[0].mxu0
    %v1924 = vadd.f32 0.0, %v1923
    %v1925 = vpop.f32.mrb[0].mxu0
    %1926 = vmatprep.mubr.f32.mxu0 0.0
    %1927 = vmatmul.mubr.f32.gmra.mrb[0].mxu0 %v1441
    %v1928 = vpop.f32.mrb[0].mxu0
    %v1929 = vadd.f32 0.0, %v1928
    %v1930 = vpop.f32.mrb[0].mxu0
    %1931 = vmatprep.mubr.f32.mxu0 0.0
    %1932 = vmatmul.mubr.f32.gmra.mrb[0].mxu0 %v1444
    %v1933 = vpop.f32.mrb[0].mxu0
    %v1934 = vadd.f32 0.0, %v1933
    %v1935 = vpop.f32.mrb[0].mxu0
    %1936 = vmatprep.mubr.f32.mxu0 0.0
    %1937 = vmatmul.mubr.f32.gmra.mrb[0].mxu0 %v1447
    %v1938 = vpop.f32.mrb[0].mxu0
    %v1939 = vadd.f32 0.0, %v1938
    %v1940 = vpop.f32.mrb[0].mxu0
    %1941 = vmatprep.mubr.f32.mxu0 0.0
    %1942 = vmatmul.mubr.f32.gmra.mrb[0].mxu0 %v1450
    %v1943 = vpop.f32.mrb[0].mxu0
    %v1944 = vadd.f32 0.0, %v1943
    %v1945 = vpop.f32.mrb[0].mxu0
    %1946 = vmatprep.mubr.f32.mxu0 0.0
    %1947 = vmatmul.mubr.f32.gmra.mrb[0].mxu0 %v1453
    %v1948 = vpop.f32.mrb[0].mxu0
    %v1949 = vadd.f32 0.0, %v1948
    %v1950 = vpop.f32.mrb[0].mxu0
    %1951 = vmatprep.mubr.f32.mxu0 0.0
    %1952 = vmatmul.mubr.f32.gmra.mrb[0].mxu0 %v1456
    %v1953 = vpop.f32.mrb[0].mxu0
    %v1954 = vadd.f32 0.0, %v1953
    %v1955 = vpop.f32.mrb[0].mxu0
    %1956 = vmatprep.mubr.f32.mxu0 0.0
    %1957 = vmatmul.mubr.f32.gmra.mrb[0].mxu0 %v1459
    %v1958 = vpop.f32.mrb[0].mxu0
    %v1959 = vadd.f32 0.0, %v1958
    %v1960 = vpop.f32.mrb[0].mxu0
    %1961 = vmatprep.mubr.f32.mxu0 0.0
    %1962 = vmatmul.mubr.f32.gmra.mrb[0].mxu0 %v1462
    %v1963 = vpop.f32.mrb[0].mxu0
    %v1964 = vadd.f32 0.0, %v1963
    %v1965 = vpop.f32.mrb[0].mxu0
    %1966 = vmatprep.mubr.f32.mxu0 0.0
    %1967 = vmatmul.mubr.f32.gmra.mrb[0].mxu0 %v1465
    %v1968 = vpop.f32.mrb[0].mxu0
    %v1969 = vadd.f32 0.0, %v1968
    %v1970 = vpop.f32.mrb[0].mxu0
    %1971 = vmatprep.mubr.f32.mxu0 0.0
    %1972 = vmatmul.mubr.f32.gmra.mrb[0].mxu0 %v1468
    %v1973 = vpop.f32.mrb[0].mxu0
    %v1974 = vadd.f32 0.0, %v1973
    %v1975 = vpop.f32.mrb[0].mxu0
    %1976 = vmatprep.mubr.f32.mxu0 0.0
    %1977 = vmatmul.mubr.f32.gmra.mrb[0].mxu0 %v1471
    %v1978 = vpop.f32.mrb[0].mxu0
    %v1979 = vadd.f32 0.0, %v1978
    %v1980 = vpop.f32.mrb[0].mxu0
    %1981 = vmatprep.mubr.f32.mxu0 0.0
    %1982 = vmatmul.mubr.f32.gmra.mrb[0].mxu0 %v1474
    %v1983 = vpop.f32.mrb[0].mxu0
    %v1984 = vadd.f32 0.0, %v1983
    %v1985 = vpop.f32.mrb[0].mxu0
    %1986 = vmatprep.mubr.f32.mxu0 0.0
    %1987 = vmatmul.mubr.f32.gmra.mrb[0].mxu0 %v1477
    %v1988 = vpop.f32.mrb[0].mxu0
    %v1989 = vadd.f32 0.0, %v1988
    %v1990 = vpop.f32.mrb[0].mxu0
    %1991 = vmatprep.mubr.f32.mxu0 0.0
    %1992 = vmatmul.mubr.f32.gmra.mrb[0].mxu0 %v1480
    %v1993 = vpop.f32.mrb[0].mxu0
    %v1994 = vadd.f32 0.0, %v1993
    %v1995 = vpop.f32.mrb[0].mxu0
    %1996 = vmatprep.mubr.f32.mxu0 0.0
    %1997 = vmatmul.mubr.f32.gmra.mrb[0].mxu0 %v1483
    %v1998 = vpop.f32.mrb[0].mxu0
    %v1999 = vadd.f32 0.0, %v1998
    %v2000 = vpop.f32.mrb[0].mxu0
    %2001 = vmatprep.mubr.f32.mxu0 0.0
    %2002 = vmatmul.mubr.f32.gmra.mrb[0].mxu0 %v1486
    %v2003 = vpop.f32.mrb[0].mxu0
    %v2004 = vadd.f32 0.0, %v2003
    %v2005 = vpop.f32.mrb[0].mxu0
    %2006 = vmatprep.mubr.f32.mxu0 0.0
    %2007 = vmatmul.mubr.f32.gmra.mrb[0].mxu0 %v1489
    %v2008 = vpop.f32.mrb[0].mxu0
    %v2009 = vadd.f32 0.0, %v2008
    %v2010 = vpop.f32.mrb[0].mxu0
    %2011 = vmatprep.mubr.f32.mxu0 0.0
    %2012 = vmatmul.mubr.f32.gmra.mrb[0].mxu0 %v1492
    %v2013 = vpop.f32.mrb[0].mxu0
    %v2014 = vadd.f32 0.0, %v2013
    %v2015 = vpop.f32.mrb[0].mxu0
    %2016 = vmatprep.mubr.f32.mxu0 0.0
    %2017 = vmatmul.mubr.f32.gmra.mrb[0].mxu0 %v1495
    %v2018 = vpop.f32.mrb[0].mxu0
    %v2019 = vadd.f32 0.0, %v2018
    %v2020 = vpop.f32.mrb[0].mxu0
    %2021 = vmatprep.mubr.f32.mxu0 0.0
    %2022 = vmatmul.mubr.f32.gmra.mrb[0].mxu0 %v1498
    %v2023 = vpop.f32.mrb[0].mxu0
    %v2024 = vadd.f32 0.0, %v2023
    %v2025 = vpop.f32.mrb[0].mxu0
    %2026 = vmatprep.mubr.f32.mxu0 0.0
    %2027 = vmatmul.mubr.f32.gmra.mrb[0].mxu0 %v1501
    %v2028 = vpop.f32.mrb[0].mxu0
    %v2029 = vadd.f32 0.0, %v2028
    %v2030 = vpop.f32.mrb[0].mxu0
    %2031 = vmatprep.mubr.f32.mxu0 0.0
    %2032 = vmatmul.mubr.f32.gmra.mrb[0].mxu0 %v1504
    %v2033 = vpop.f32.mrb[0].mxu0
    %v2034 = vadd.f32 0.0, %v2033
    %v2035 = vpop.f32.mrb[0].mxu0
    %2036 = vmatprep.mubr.f32.mxu0 0.0
    %2037 = vmatmul.mubr.f32.gmra.mrb[0].mxu0 %v1507
    %v2038 = vpop.f32.mrb[0].mxu0
    %v2039 = vadd.f32 0.0, %v2038
    %v2040 = vpop.f32.mrb[0].mxu0
    %2041 = vmatprep.mubr.f32.mxu0 0.0
    %2042 = vmatmul.mubr.f32.gmra.mrb[0].mxu0 %v1510
    %v2043 = vpop.f32.mrb[0].mxu0
    %v2044 = vadd.f32 0.0, %v2043
    %v2045 = vpop.f32.mrb[0].mxu0
    %2046 = vmatprep.mubr.f32.mxu0 0.0
    %2047 = vmatmul.mubr.f32.gmra.mrb[0].mxu0 %v1513
    %v2048 = vpop.f32.mrb[0].mxu0
    %v2049 = vadd.f32 0.0, %v2048
    %v2050 = vpop.f32.mrb[0].mxu0
    %2051 = vmatprep.mubr.f32.mxu0 0.0
    %2052 = vmatmul.mubr.f32.gmra.mrb[0].mxu0 %v1516
    %v2053 = vpop.f32.mrb[0].mxu0
    %v2054 = vadd.f32 0.0, %v2053
    %v2055 = vpop.f32.mrb[0].mxu0
    %2056 = vmatprep.mubr.f32.mxu0 0.0
    %2057 = vmatmul.mubr.f32.gmra.mrb[0].mxu0 %v1519
    %v2058 = vpop.f32.mrb[0].mxu0
    %v2059 = vadd.f32 0.0, %v2058
    %v2060 = vpop.f32.mrb[0].mxu0
    %2061 = vmatprep.mubr.f32.mxu0 0.0
    %2062 = vmatmul.mubr.f32.gmra.mrb[0].mxu0 %v1522
    %v2063 = vpop.f32.mrb[0].mxu0
    %v2064 = vadd.f32 0.0, %v2063
    %v2065 = vpop.f32.mrb[0].mxu0
    %2066 = vmatprep.mubr.f32.mxu0 0.0
    %2067 = vmatmul.mubr.f32.gmra.mrb[0].mxu0 %v1525
    %v2068 = vpop.f32.mrb[0].mxu0
    %v2069 = vadd.f32 0.0, %v2068
    %v2070 = vpop.f32.mrb[0].mxu0
    %2071 = vmatprep.mubr.f32.mxu0 0.0
    %2072 = vmatmul.mubr.f32.gmra.mrb[0].mxu0 %v1528
    %v2073 = vpop.f32.mrb[0].mxu0
    %v2074 = vadd.f32 0.0, %v2073
    %v2075 = vpop.f32.mrb[0].mxu0
    %2076 = vmatprep.mubr.f32.mxu0 0.0
    %2077 = vmatmul.mubr.f32.gmra.mrb[0].mxu0 %v1531
    %v2078 = vpop.f32.mrb[0].mxu0
    %v2079 = vadd.f32 0.0, %v2078
    %v2080 = vpop.f32.mrb[0].mxu0
    %2081 = vmatprep.mubr.f32.mxu0 0.0
    %2082 = vmatmul.mubr.f32.gmra.mrb[0].mxu0 %v1534
    %v2083 = vpop.f32.mrb[0].mxu0
    %v2084 = vadd.f32 0.0, %v2083
    %v2085 = vpop.f32.mrb[0].mxu0
    %2086 = vmatprep.mubr.f32.mxu0 0.0
    %2087 = vmatmul.mubr.f32.gmra.mrb[0].mxu0 %v1537
    %v2088 = vpop.f32.mrb[0].mxu0
    %v2089 = vadd.f32 0.0, %v2088
    %v2090 = vpop.f32.mrb[0].mxu0
    %2091 = vmatprep.mubr.f32.mxu0 0.0
    %2092 = vmatmul.mubr.f32.gmra.mrb[0].mxu0 %v1540
    %v2093 = vpop.f32.mrb[0].mxu0
    %v2094 = vadd.f32 0.0, %v2093
    %v2095 = vpop.f32.mrb[0].mxu0
    %2096 = vmatprep.mubr.f32.mxu0 0.0
    %2097 = vmatmul.mubr.f32.gmra.mrb[0].mxu0 %v1543
    %v2098 = vpop.f32.mrb[0].mxu0
    %v2099 = vadd.f32 0.0, %v2098
    %v2100 = vpop.f32.mrb[0].mxu0
    %2101 = vmatprep.mubr.f32.mxu0 0.0
    %2102 = vmatmul.mubr.f32.gmra.mrb[0].mxu0 %v1546
    %v2103 = vpop.f32.mrb[0].mxu0
    %v2104 = vadd.f32 0.0, %v2103
    %v2105 = vpop.f32.mrb[0].mxu0
    %2106 = vmatprep.mubr.f32.mxu0 0.0
    %2107 = vmatmul.mubr.f32.gmra.mrb[0].mxu0 %v1549
    %v2108 = vpop.f32.mrb[0].mxu0
    %v2109 = vadd.f32 0.0, %v2108
    %v2110 = vpop.f32.mrb[0].mxu0
    %2111 = vmatprep.mubr.f32.mxu0 0.0
    %2112 = vmatmul.mubr.f32.gmra.mrb[0].mxu0 %v1552
    %v2113 = vpop.f32.mrb[0].mxu0
    %v2114 = vadd.f32 0.0, %v2113
    %v2115 = vpop.f32.mrb[0].mxu0
    %2116 = vmatprep.mubr.f32.mxu0 0.0
    %2117 = vmatmul.mubr.f32.gmra.mrb[0].mxu0 %v1555
    %v2118 = vpop.f32.mrb[0].mxu0
    %v2119 = vadd.f32 0.0, %v2118
    %v2120 = vpop.f32.mrb[0].mxu0
    %2121 = vmatprep.mubr.f32.mxu0 0.0
    %2122 = vmatmul.mubr.f32.gmra.mrb[0].mxu0 %v1558
    %v2123 = vpop.f32.mrb[0].mxu0
    %v2124 = vadd.f32 0.0, %v2123
    %v2125 = vpop.f32.mrb[0].mxu0
    %2126 = vmatprep.mubr.f32.mxu0 0.0
    %2127 = vmatmul.mubr.f32.gmra.mrb[0].mxu0 %v1561
    %v2128 = vpop.f32.mrb[0].mxu0
    %v2129 = vadd.f32 0.0, %v2128
    %v2130 = vpop.f32.mrb[0].mxu0
    %2131 = vmatprep.mubr.f32.mxu0 0.0
    %2132 = vmatmul.mubr.f32.gmra.mrb[0].mxu0 %v1564
    %v2133 = vpop.f32.mrb[0].mxu0
    %v2134 = vadd.f32 0.0, %v2133
    %v2135 = vpop.f32.mrb[0].mxu0
    %2136 = vmatprep.mubr.f32.mxu0 0.0
    %2137 = vmatmul.mubr.f32.gmra.mrb[0].mxu0 %v1567
    %v2138 = vpop.f32.mrb[0].mxu0
    %v2139 = vadd.f32 0.0, %v2138
    %v2140 = vpop.f32.mrb[0].mxu0
    %2141 = vmatprep.mubr.f32.mxu0 0.0
    %2142 = vmatmul.mubr.f32.gmra.mrb[0].mxu0 %v1570
    %v2143 = vpop.f32.mrb[0].mxu0
    %v2144 = vadd.f32 0.0, %v2143
    %v2145 = vpop.f32.mrb[0].mxu0
    %2146 = vmatprep.mubr.f32.mxu0 0.0
    %2147 = vmatmul.mubr.f32.gmra.mrb[0].mxu0 %v1573
    %v2148 = vpop.f32.mrb[0].mxu0
    %v2149 = vadd.f32 0.0, %v2148
    %v2150 = vpop.f32.mrb[0].mxu0
    %2151 = vmatprep.mubr.f32.mxu0 0.0
    %2152 = vmatmul.mubr.f32.gmra.mrb[0].mxu0 %v1576
    %v2153 = vpop.f32.mrb[0].mxu0
    %v2154 = vadd.f32 0.0, %v2153
    %v2155 = vpop.f32.mrb[0].mxu0
    %2156 = vmatprep.mubr.f32.mxu0 0.0
    %2157 = vmatmul.mubr.f32.gmra.mrb[0].mxu0 %v1579
    %v2158 = vpop.f32.mrb[0].mxu0
    %v2159 = vadd.f32 0.0, %v2158
    %v2160 = vpop.f32.mrb[0].mxu0
    %2161 = vmatprep.mubr.f32.mxu0 0.0
    %2162 = vmatmul.mubr.f32.gmra.mrb[0].mxu0 %v1582
    %v2163 = vpop.f32.mrb[0].mxu0
    %v2164 = vadd.f32 0.0, %v2163
    %v2165 = vpop.f32.mrb[0].mxu0
    %2166 = vmatprep.mubr.f32.mxu0 0.0
    %2167 = vmatmul.mubr.f32.gmra.mrb[0].mxu0 %v1585
    %v2168 = vpop.f32.mrb[0].mxu0
    %v2169 = vadd.f32 0.0, %v2168
    %v2170 = vpop.f32.mrb[0].mxu0
    %2171 = vmatprep.mubr.f32.mxu0 0.0
    %2172 = vmatmul.mubr.f32.gmra.mrb[0].mxu0 %v1588
    %v2173 = vpop.f32.mrb[0].mxu0
    %v2174 = vadd.f32 0.0, %v2173
    %v2175 = vpop.f32.mrb[0].mxu0
    %2176 = vmatprep.mubr.f32.mxu0 0.0
    %2177 = vmatmul.mubr.f32.gmra.mrb[0].mxu0 %v1591
    %v2178 = vpop.f32.mrb[0].mxu0
    %v2179 = vadd.f32 0.0, %v2178
    %v2180 = vpop.f32.mrb[0].mxu0
    %2181 = vmatprep.mubr.f32.mxu0 0.0
    %2182 = vmatmul.mubr.f32.gmra.mrb[0].mxu0 %v1594
    %v2183 = vpop.f32.mrb[0].mxu0
    %v2184 = vadd.f32 0.0, %v2183
    %v2185 = vpop.f32.mrb[0].mxu0
    %2186 = vmatprep.mubr.f32.mxu0 0.0
    %2187 = vmatmul.mubr.f32.gmra.mrb[0].mxu0 %v1597
    %v2188 = vpop.f32.mrb[0].mxu0
    %v2189 = vadd.f32 0.0, %v2188
    %v2190 = vpop.f32.mrb[0].mxu0
    %2191 = vmatprep.mubr.f32.mxu0 0.0
    %2192 = vmatmul.mubr.f32.gmra.mrb[0].mxu0 %v1600
    %v2193 = vpop.f32.mrb[0].mxu0
    %v2194 = vadd.f32 0.0, %v2193
    %v2195 = vpop.f32.mrb[0].mxu0
    %2196 = vmatprep.mubr.f32.mxu0 0.0
    %2197 = vmatmul.mubr.f32.gmra.mrb[0].mxu0 %v1603
    %v2198 = vpop.f32.mrb[0].mxu0
    %v2199 = vadd.f32 0.0, %v2198
    %v2200 = vpop.f32.mrb[0].mxu0
    %2201 = vmatprep.mubr.f32.mxu0 0.0
    %2202 = vmatmul.mubr.f32.gmra.mrb[0].mxu0 %v1606
    %v2203 = vpop.f32.mrb[0].mxu0
    %v2204 = vadd.f32 0.0, %v2203
    %v2205 = vpop.f32.mrb[0].mxu0
    %2206 = vmatprep.mubr.f32.mxu0 0.0
    %2207 = vmatmul.mubr.f32.gmra.mrb[0].mxu0 %v1609
    %v2208 = vpop.f32.mrb[0].mxu0
    %v2209 = vadd.f32 0.0, %v2208
    %v2210 = vpop.f32.mrb[0].mxu0
    %2211 = vmatprep.mubr.f32.mxu0 0.0
    %2212 = vmatmul.mubr.f32.gmra.mrb[0].mxu0 %v1612
    %v2213 = vpop.f32.mrb[0].mxu0
    %v2214 = vadd.f32 0.0, %v2213
    %v2215 = vpop.f32.mrb[0].mxu0
    %2216 = vmatprep.mubr.f32.mxu0 0.0
    %2217 = vmatmul.mubr.f32.gmra.mrb[0].mxu0 %v1615
    %v2218 = vpop.f32.mrb[0].mxu0
    %v2219 = vadd.f32 0.0, %v2218
    %v2220 = vpop.f32.mrb[0].mxu0
    %2221 = vmatprep.mubr.f32.mxu0 0.0
    %2222 = vmatmul.mubr.f32.gmra.mrb[0].mxu0 %v1618
    %v2223 = vpop.f32.mrb[0].mxu0
    %v2224 = vadd.f32 0.0, %v2223
    %v2225 = vpop.f32.mrb[0].mxu0
    %2226 = vmatprep.mubr.f32.mxu0 0.0
    %2227 = vmatmul.mubr.f32.gmra.mrb[0].mxu0 %v1621
    %v2228 = vpop.f32.mrb[0].mxu0
    %v2229 = vadd.f32 0.0, %v2228
    %v2230 = vpop.f32.mrb[0].mxu0
    %2231 = vmatprep.mubr.f32.mxu0 0.0
    %2232 = vmatmul.mubr.f32.gmra.mrb[0].mxu0 %v1624
    %v2233 = vpop.f32.mrb[0].mxu0
    %v2234 = vadd.f32 0.0, %v2233
    %v2235 = vpop.f32.mrb[0].mxu0
    %2236 = vmatprep.mubr.f32.mxu0 0.0
    %2237 = vmatmul.mubr.f32.gmra.mrb[0].mxu0 %v1627
    %v2238 = vpop.f32.mrb[0].mxu0
    %v2239 = vadd.f32 0.0, %v2238
    %v2240 = vpop.f32.mrb[0].mxu0
    %2241 = vmatprep.mubr.f32.mxu0 0.0
    %2242 = vmatmul.mubr.f32.gmra.mrb[0].mxu0 %v1630
    %v2243 = vpop.f32.mrb[0].mxu0
    %v2244 = vadd.f32 0.0, %v2243
    %v2245 = vpop.f32.mrb[0].mxu0
    %2246 = vmatprep.mubr.f32.mxu0 0.0
    %2247 = vmatmul.mubr.f32.gmra.mrb[0].mxu0 %v1633
    %v2248 = vpop.f32.mrb[0].mxu0
    %v2249 = vadd.f32 0.0, %v2248
    %v2250 = vpop.f32.mrb[0].mxu0
    %2251 = vmatprep.mubr.f32.mxu0 0.0
    %2252 = vmatmul.mubr.f32.gmra.mrb[0].mxu0 %v1636
    %v2253 = vpop.f32.mrb[0].mxu0
    %v2254 = vadd.f32 0.0, %v2253
    %v2255 = vpop.f32.mrb[0].mxu0
    %2256 = vmatprep.mubr.f32.mxu0 0.0
    %2257 = vmatmul.mubr.f32.gmra.mrb[0].mxu0 %v1639
    %v2258 = vpop.f32.mrb[0].mxu0
    %v2259 = vadd.f32 0.0, %v2258
    %v2260 = vpop.f32.mrb[0].mxu0
    %2261 = vmatprep.mubr.f32.mxu0 0.0
    %2262 = vmatmul.mubr.f32.gmra.mrb[0].mxu0 %v1642
    %v2263 = vpop.f32.mrb[0].mxu0
    %v2264 = vadd.f32 0.0, %v2263
    %v2265 = vpop.f32.mrb[0].mxu0
    %2266 = vmatprep.mubr.f32.mxu0 0.0
    %2267 = vmatmul.mubr.f32.gmra.mrb[0].mxu0 %v1645
    %v2268 = vpop.f32.mrb[0].mxu0
    %v2269 = vadd.f32 0.0, %v2268
    %v2270 = vpop.f32.mrb[0].mxu0
    %2271 = vmatprep.mubr.f32.mxu0 0.0
    %2272 = vmatmul.mubr.f32.gmra.mrb[0].mxu0 %v1648
    %v2273 = vpop.f32.mrb[0].mxu0
    %v2274 = vadd.f32 0.0, %v2273
    %v2275 = vpop.f32.mrb[0].mxu0
    %2276 = vmatprep.mubr.f32.mxu0 0.0
    %2277 = vmatmul.mubr.f32.gmra.mrb[0].mxu0 %v1651
    %v2278 = vpop.f32.mrb[0].mxu0
    %v2279 = vadd.f32 0.0, %v2278
    %v2280 = vpop.f32.mrb[0].mxu0
    %2281 = vmatprep.mubr.f32.mxu0 0.0
    %2282 = vmatmul.mubr.f32.gmra.mrb[0].mxu0 %v1654
    %v2283 = vpop.f32.mrb[0].mxu0
    %v2284 = vadd.f32 0.0, %v2283
    %v2285 = vpop.f32.mrb[0].mxu0
    %2286 = vmatprep.mubr.f32.mxu0 0.0
    %2287 = vmatmul.mubr.f32.gmra.mrb[0].mxu0 %v1657
    %v2288 = vpop.f32.mrb[0].mxu0
    %v2289 = vadd.f32 0.0, %v2288
    %v2290 = vpop.f32.mrb[0].mxu0
    %2291 = vmatprep.mubr.f32.mxu0 0.0
    %2292 = vmatmul.mubr.f32.gmra.mrb[0].mxu0 %v1660
    %v2293 = vpop.f32.mrb[0].mxu0
    %v2294 = vadd.f32 0.0, %v2293
    %v2295 = vpop.f32.mrb[0].mxu0
    %2296 = vmatprep.mubr.f32.mxu0 0.0
    %2297 = vmatmul.mubr.f32.gmra.mrb[0].mxu0 %v1663
    %v2298 = vpop.f32.mrb[0].mxu0
    %v2299 = vadd.f32 0.0, %v2298
    %v2300 = vpop.f32.mrb[0].mxu0
    %2301 = vmatprep.mubr.f32.mxu0 0.0
    %2302 = vmatmul.mubr.f32.gmra.mrb[0].mxu0 %v1666
    %v2303 = vpop.f32.mrb[0].mxu0
    %v2304 = vadd.f32 0.0, %v2303
    %v2305 = vpop.f32.mrb[0].mxu0
    %2306 = vmatprep.mubr.f32.mxu0 0.0
    %2307 = vmatmul.mubr.f32.gmra.mrb[0].mxu0 %v1669
    %v2308 = vpop.f32.mrb[0].mxu0
    %v2309 = vadd.f32 0.0, %v2308
    %v2310 = vpop.f32.mrb[0].mxu0
    %2311 = vmatprep.mubr.f32.mxu0 0.0
    %2312 = vmatmul.mubr.f32.gmra.mrb[0].mxu0 %v1672
    %v2313 = vpop.f32.mrb[0].mxu0
    %v2314 = vadd.f32 0.0, %v2313
    %v2315 = vpop.f32.mrb[0].mxu0
    %2316 = vmatprep.mubr.f32.mxu0 0.0
    %2317 = vmatmul.mubr.f32.gmra.mrb[0].mxu0 %v1675
    %v2318 = vpop.f32.mrb[0].mxu0
    %v2319 = vadd.f32 0.0, %v2318
    %v2320 = vpop.f32.mrb[0].mxu0
    %2321 = vmatprep.mubr.f32.mxu0 0.0
    %2322 = vmatmul.mubr.f32.gmra.mrb[0].mxu0 %v1678
    %v2323 = vpop.f32.mrb[0].mxu0
    %v2324 = vadd.f32 0.0, %v2323
    %v2325 = vpop.f32.mrb[0].mxu0
    %2326 = vmatprep.mubr.f32.mxu0 0.0
    %2327 = vmatmul.mubr.f32.gmra.mrb[0].mxu0 %v1681
    %v2328 = vpop.f32.mrb[0].mxu0
    %v2329 = vadd.f32 0.0, %v2328
    %v2330 = vpop.f32.mrb[0].mxu0
    %2331 = vmatprep.mubr.f32.mxu0 0.0
    %2332 = vmatmul.mubr.f32.gmra.mrb[0].mxu0 %v1684
    %v2333 = vpop.f32.mrb[0].mxu0
    %v2334 = vadd.f32 0.0, %v2333
    %v2335 = vpop.f32.mrb[0].mxu0
    %2336 = vmatprep.mubr.f32.mxu0 0.0
    %2337 = vmatmul.mubr.f32.gmra.mrb[0].mxu0 %v1687
    %v2338 = vpop.f32.mrb[0].mxu0
    %v2339 = vadd.f32 0.0, %v2338
    %v2340 = vpop.f32.mrb[0].mxu0
    %2341 = vmatprep.mubr.f32.mxu0 0.0
    %2342 = vmatmul.mubr.f32.gmra.mrb[0].mxu0 %v1690
    %v2343 = vpop.f32.mrb[0].mxu0
    %v2344 = vadd.f32 0.0, %v2343
    %v2345 = vpop.f32.mrb[0].mxu0
    %2346 = vmatprep.mubr.f32.mxu0 0.0
    %2347 = vmatmul.mubr.f32.gmra.mrb[0].mxu0 %v1693
    %v2348 = vpop.f32.mrb[0].mxu0
    %v2349 = vadd.f32 0.0, %v2348
    %v2350 = vpop.f32.mrb[0].mxu0
    %2351 = vmatprep.mubr.f32.mxu0 0.0
    %2352 = vmatmul.mubr.f32.gmra.mrb[0].mxu0 %v1696
    %v2353 = vpop.f32.mrb[0].mxu0
    %v2354 = vadd.f32 0.0, %v2353
    %v2355 = vpop.f32.mrb[0].mxu0
    %2356 = vmatprep.mubr.f32.mxu0 0.0
    %2357 = vmatmul.mubr.f32.gmra.mrb[0].mxu0 %v1699
    %v2358 = vpop.f32.mrb[0].mxu0
    %v2359 = vadd.f32 0.0, %v2358
    %v2360 = vpop.f32.mrb[0].mxu0
    %2361 = vmatprep.mubr.f32.mxu0 0.0
    %2362 = vmatmul.mubr.f32.gmra.mrb[0].mxu0 %v1702
    %v2363 = vpop.f32.mrb[0].mxu0
    %v2364 = vadd.f32 0.0, %v2363
    %v2365 = vpop.f32.mrb[0].mxu0
    %2366 = vmatprep.mubr.f32.mxu0 0.0
    %2367 = vmatmul.mubr.f32.gmra.mrb[0].mxu0 %v1705
    %v2368 = vpop.f32.mrb[0].mxu0
    %v2369 = vadd.f32 0.0, %v2368
    %v2370 = vpop.f32.mrb[0].mxu0
    %2371 = vmatprep.mubr.f32.mxu0 0.0
    %2372 = vmatmul.mubr.f32.gmra.mrb[0].mxu0 %v1708
    %v2373 = vpop.f32.mrb[0].mxu0
    %v2374 = vadd.f32 0.0, %v2373
    %v2375 = vpop.f32.mrb[0].mxu0
    %2376 = vmatprep.mubr.f32.mxu0 0.0
    %2377 = vmatmul.mubr.f32.gmra.mrb[0].mxu0 %v1711
    %v2378 = vpop.f32.mrb[0].mxu0
    %v2379 = vadd.f32 0.0, %v2378
    %v2380 = vpop.f32.mrb[0].mxu0
    %2381 = vmatprep.mubr.f32.mxu0 0.0
    %2382 = vmatmul.mubr.f32.gmra.mrb[0].mxu0 %v1714
    %v2383 = vpop.f32.mrb[0].mxu0
    %v2384 = vadd.f32 0.0, %v2383
    %v2385 = vpop.f32.mrb[0].mxu0
    %2386 = vmatprep.mubr.f32.mxu0 0.0
    %2387 = vmatmul.mubr.f32.gmra.mrb[0].mxu0 %v1717
    %v2388 = vpop.f32.mrb[0].mxu0
    %v2389 = vadd.f32 0.0, %v2388
    %v2390 = vpop.f32.mrb[0].mxu0
    %2391 = vmatprep.mubr.f32.mxu0 0.0
    %2392 = vmatmul.mubr.f32.gmra.mrb[0].mxu0 %v1720
    %v2393 = vpop.f32.mrb[0].mxu0
    %v2394 = vadd.f32 0.0, %v2393
    %v2395 = vpop.f32.mrb[0].mxu0
    %2396 = vmatprep.mubr.f32.mxu0 0.0
    %2397 = vmatmul.mubr.f32.gmra.mrb[0].mxu0 %v1723
    %v2398 = vpop.f32.mrb[0].mxu0
    %v2399 = vadd.f32 0.0, %v2398
    %v2400 = vpop.f32.mrb[0].mxu0
    %2401 = vmatprep.mubr.f32.mxu0 0.0
    %2402 = vmatmul.mubr.f32.gmra.mrb[0].mxu0 %v1726
    %v2403 = vpop.f32.mrb[0].mxu0
    %v2404 = vadd.f32 0.0, %v2403
    %v2405 = vpop.f32.mrb[0].mxu0
    %2406 = vmatprep.mubr.f32.mxu0 0.0
    %2407 = vmatmul.mubr.f32.gmra.mrb[0].mxu0 %v1729
    %v2408 = vpop.f32.mrb[0].mxu0
    %v2409 = vadd.f32 0.0, %v2408
    %v2410 = vpop.f32.mrb[0].mxu0
    %2411 = vmatprep.mubr.f32.mxu0 0.0
    %2412 = vmatmul.mubr.f32.gmra.mrb[0].mxu0 %v1732
    %v2413 = vpop.f32.mrb[0].mxu0
    %v2414 = vadd.f32 0.0, %v2413
    %v2415 = vpop.f32.mrb[0].mxu0
    %2416 = vmatprep.mubr.f32.mxu0 0.0
    %2417 = vmatmul.mubr.f32.gmra.mrb[0].mxu0 %v1735
    %v2418 = vpop.f32.mrb[0].mxu0
    %v2419 = vadd.f32 0.0, %v2418
    %v2420 = vpop.f32.mrb[0].mxu0
    %2421 = vmatprep.mubr.f32.mxu0 0.0
    %2422 = vmatmul.mubr.f32.gmra.mrb[0].mxu0 %v1738
    %v2423 = vpop.f32.mrb[0].mxu0
    %v2424 = vadd.f32 0.0, %v2423
    %v2425 = vpop.f32.mrb[0].mxu0
    %2426 = vmatprep.mubr.f32.mxu0 0.0
    %2427 = vmatmul.mubr.f32.gmra.mrb[0].mxu0 %v1741
    %v2428 = vpop.f32.mrb[0].mxu0
    %v2429 = vadd.f32 0.0, %v2428
    %v2430 = vpop.f32.mrb[0].mxu0
    %2431 = vmatprep.mubr.f32.mxu0 0.0
    %2432 = vmatmul.mubr.f32.gmra.mrb[0].mxu0 %v1744
    %v2433 = vpop.f32.mrb[0].mxu0
    %v2434 = vadd.f32 0.0, %v2433
    %v2435 = vpop.f32.mrb[0].mxu0
    %2436 = vmatprep.mubr.f32.mxu0 0.0
    %2437 = vmatmul.mubr.f32.gmra.mrb[0].mxu0 %v1747
    %v2438 = vpop.f32.mrb[0].mxu0
    %v2439 = vadd.f32 0.0, %v2438
    %v2440 = vpop.f32.mrb[0].mxu0
    %2441 = vmatprep.mubr.f32.mxu0 0.0
    %2442 = vmatmul.mubr.f32.gmra.mrb[0].mxu0 %v1750
    %v2443 = vpop.f32.mrb[0].mxu0
    %v2444 = vadd.f32 0.0, %v2443
    %v2445 = vpop.f32.mrb[0].mxu0
    %2446 = vmatprep.mubr.f32.mxu0 0.0
    %2447 = vmatmul.mubr.f32.gmra.mrb[0].mxu0 %v1753
    %v2448 = vpop.f32.mrb[0].mxu0
    %v2449 = vadd.f32 0.0, %v2448
    %v2450 = vpop.f32.mrb[0].mxu0
    %2451 = vmatprep.mubr.f32.mxu0 0.0
    %2452 = vmatmul.mubr.f32.gmra.mrb[0].mxu0 %v1756
    %v2453 = vpop.f32.mrb[0].mxu0
    %v2454 = vadd.f32 0.0, %v2453
    %v2455 = vpop.f32.mrb[0].mxu0
    %2456 = vmatprep.mubr.f32.mxu0 0.0
    %2457 = vmatmul.mubr.f32.gmra.mrb[0].mxu0 %v1759
    %v2458 = vpop.f32.mrb[0].mxu0
    %v2459 = vadd.f32 0.0, %v2458
    %v2460 = vpop.f32.mrb[0].mxu0
    %2461 = vmatprep.mubr.f32.mxu0 0.0
    %2462 = vmatmul.mubr.f32.gmra.mrb[0].mxu0 %v1762
    %v2463 = vpop.f32.mrb[0].mxu0
    %v2464 = vadd.f32 0.0, %v2463
    %v2465 = vpop.f32.mrb[0].mxu0
    %2466 = vmatprep.mubr.f32.mxu0 0.0
    %2467 = vmatmul.mubr.f32.gmra.mrb[0].mxu0 %v1765
    %v2468 = vpop.f32.mrb[0].mxu0
    %v2469 = vadd.f32 0.0, %v2468
    %v2470 = vpop.f32.mrb[0].mxu0
    %2471 = vdwg.mxu0
    %2472 = vxpose.xlu0.b32.start [1/16] %v1834, 128
    %2473 = vxpose.xlu0.b32.cont [2/16] %v1839, 128
    %2474 = vxpose.xlu0.b32.cont [3/16] %v1844, 128
    %2475 = vxpose.xlu0.b32.cont [4/16] %v1849, 128
    %2476 = vxpose.xlu0.b32.cont [5/16] %v1854, 128
    %2477 = vxpose.xlu0.b32.cont [6/16] %v1859, 128
    %2478 = vxpose.xlu0.b32.cont [7/16] %v1864, 128
    %2479 = vxpose.xlu0.b32.cont [8/16] %v1869, 128
    %2480 = vxpose.xlu0.b32.cont [9/16] %v1874, 128
    %2481 = vxpose.xlu0.b32.cont [10/16] %v1879, 128
    %2482 = vxpose.xlu0.b32.cont [11/16] %v1884, 128
    %2483 = vxpose.xlu0.b32.cont [12/16] %v1889, 128
    %2484 = vxpose.xlu0.b32.cont [13/16] %v1894, 128
    %2485 = vxpose.xlu0.b32.cont [14/16] %v1899, 128
    %2486 = vxpose.xlu0.b32.cont [15/16] %v1904, 128
    %2487 = vxpose.xlu0.b32.end [16/16] %v1909, 128
    %v2488 = vpop.trf.xlu0
    %v2489 = vpop.trf.xlu0
    %v2490 = vpop.trf.xlu0
    %v2491 = vpop.trf.xlu0
    %v2492 = vpop.trf.xlu0
    %v2493 = vpop.trf.xlu0
    %v2494 = vpop.trf.xlu0
    %v2495 = vpop.trf.xlu0
    %v2496 = vpop.trf.xlu0
    %v2497 = vpop.trf.xlu0
    %v2498 = vpop.trf.xlu0
    %v2499 = vpop.trf.xlu0
    %v2500 = vpop.trf.xlu0
    %v2501 = vpop.trf.xlu0
    %v2502 = vpop.trf.xlu0
    %v2503 = vpop.trf.xlu0
    %2504 = vxpose.xlu0.b32.start [1/16] %v1914, 128
    %2505 = vxpose.xlu0.b32.cont [2/16] %v1919, 128
    %2506 = vxpose.xlu0.b32.cont [3/16] %v1924, 128
    %2507 = vxpose.xlu0.b32.cont [4/16] %v1929, 128
    %2508 = vxpose.xlu0.b32.cont [5/16] %v1934, 128
    %2509 = vxpose.xlu0.b32.cont [6/16] %v1939, 128
    %2510 = vxpose.xlu0.b32.cont [7/16] %v1944, 128
    %2511 = vxpose.xlu0.b32.cont [8/16] %v1949, 128
    %2512 = vxpose.xlu0.b32.cont [9/16] %v1954, 128
    %2513 = vxpose.xlu0.b32.cont [10/16] %v1959, 128
    %2514 = vxpose.xlu0.b32.cont [11/16] %v1964, 128
    %2515 = vxpose.xlu0.b32.cont [12/16] %v1969, 128
    %2516 = vxpose.xlu0.b32.cont [13/16] %v1974, 128
    %2517 = vxpose.xlu0.b32.cont [14/16] %v1979, 128
    %2518 = vxpose.xlu0.b32.cont [15/16] %v1984, 128
    %2519 = vxpose.xlu0.b32.end [16/16] %v1989, 128
    %v2520 = vpop.trf.xlu0
    %v2521 = vpop.trf.xlu0
    %v2522 = vpop.trf.xlu0
    %v2523 = vpop.trf.xlu0
    %v2524 = vpop.trf.xlu0
    %v2525 = vpop.trf.xlu0
    %v2526 = vpop.trf.xlu0
    %v2527 = vpop.trf.xlu0
    %v2528 = vpop.trf.xlu0
    %v2529 = vpop.trf.xlu0
    %v2530 = vpop.trf.xlu0
    %v2531 = vpop.trf.xlu0
    %v2532 = vpop.trf.xlu0
    %v2533 = vpop.trf.xlu0
    %v2534 = vpop.trf.xlu0
    %v2535 = vpop.trf.xlu0
    %2536 = vxpose.xlu0.b32.start [1/16] %v1994, 128
    %2537 = vxpose.xlu0.b32.cont [2/16] %v1999, 128
    %2538 = vxpose.xlu0.b32.cont [3/16] %v2004, 128
    %2539 = vxpose.xlu0.b32.cont [4/16] %v2009, 128
    %2540 = vxpose.xlu0.b32.cont [5/16] %v2014, 128
    %2541 = vxpose.xlu0.b32.cont [6/16] %v2019, 128
    %2542 = vxpose.xlu0.b32.cont [7/16] %v2024, 128
    %2543 = vxpose.xlu0.b32.cont [8/16] %v2029, 128
    %2544 = vxpose.xlu0.b32.cont [9/16] %v2034, 128
    %2545 = vxpose.xlu0.b32.cont [10/16] %v2039, 128
    %2546 = vxpose.xlu0.b32.cont [11/16] %v2044, 128
    %2547 = vxpose.xlu0.b32.cont [12/16] %v2049, 128
    %2548 = vxpose.xlu0.b32.cont [13/16] %v2054, 128
    %2549 = vxpose.xlu0.b32.cont [14/16] %v2059, 128
    %2550 = vxpose.xlu0.b32.cont [15/16] %v2064, 128
    %2551 = vxpose.xlu0.b32.end [16/16] %v2069, 128
    %v2552 = vpop.trf.xlu0
    %v2553 = vpop.trf.xlu0
    %v2554 = vpop.trf.xlu0
    %v2555 = vpop.trf.xlu0
    %v2556 = vpop.trf.xlu0
    %v2557 = vpop.trf.xlu0
    %v2558 = vpop.trf.xlu0
    %v2559 = vpop.trf.xlu0
    %v2560 = vpop.trf.xlu0
    %v2561 = vpop.trf.xlu0
    %v2562 = vpop.trf.xlu0
    %v2563 = vpop.trf.xlu0
    %v2564 = vpop.trf.xlu0
    %v2565 = vpop.trf.xlu0
    %v2566 = vpop.trf.xlu0
    %v2567 = vpop.trf.xlu0
    %2568 = vxpose.xlu0.b32.start [1/16] %v2074, 128
    %2569 = vxpose.xlu0.b32.cont [2/16] %v2079, 128
    %2570 = vxpose.xlu0.b32.cont [3/16] %v2084, 128
    %2571 = vxpose.xlu0.b32.cont [4/16] %v2089, 128
    %2572 = vxpose.xlu0.b32.cont [5/16] %v2094, 128
    %2573 = vxpose.xlu0.b32.cont [6/16] %v2099, 128
    %2574 = vxpose.xlu0.b32.cont [7/16] %v2104, 128
    %2575 = vxpose.xlu0.b32.cont [8/16] %v2109, 128
    %2576 = vxpose.xlu0.b32.cont [9/16] %v2114, 128
    %2577 = vxpose.xlu0.b32.cont [10/16] %v2119, 128
    %2578 = vxpose.xlu0.b32.cont [11/16] %v2124, 128
    %2579 = vxpose.xlu0.b32.cont [12/16] %v2129, 128
    %2580 = vxpose.xlu0.b32.cont [13/16] %v2134, 128
    %2581 = vxpose.xlu0.b32.cont [14/16] %v2139, 128
    %2582 = vxpose.xlu0.b32.cont [15/16] %v2144, 128
    %2583 = vxpose.xlu0.b32.end [16/16] %v2149, 128
    %v2584 = vpop.trf.xlu0
    %v2585 = vpop.trf.xlu0
    %v2586 = vpop.trf.xlu0
    %v2587 = vpop.trf.xlu0
    %v2588 = vpop.trf.xlu0
    %v2589 = vpop.trf.xlu0
    %v2590 = vpop.trf.xlu0
    %v2591 = vpop.trf.xlu0
    %v2592 = vpop.trf.xlu0
    %v2593 = vpop.trf.xlu0
    %v2594 = vpop.trf.xlu0
    %v2595 = vpop.trf.xlu0
    %v2596 = vpop.trf.xlu0
    %v2597 = vpop.trf.xlu0
    %v2598 = vpop.trf.xlu0
    %v2599 = vpop.trf.xlu0
    %2600 = vxpose.xlu0.b32.start [1/16] %v2154, 128
    %2601 = vxpose.xlu0.b32.cont [2/16] %v2159, 128
    %2602 = vxpose.xlu0.b32.cont [3/16] %v2164, 128
    %2603 = vxpose.xlu0.b32.cont [4/16] %v2169, 128
    %2604 = vxpose.xlu0.b32.cont [5/16] %v2174, 128
    %2605 = vxpose.xlu0.b32.cont [6/16] %v2179, 128
    %2606 = vxpose.xlu0.b32.cont [7/16] %v2184, 128
    %2607 = vxpose.xlu0.b32.cont [8/16] %v2189, 128
    %2608 = vxpose.xlu0.b32.cont [9/16] %v2194, 128
    %2609 = vxpose.xlu0.b32.cont [10/16] %v2199, 128
    %2610 = vxpose.xlu0.b32.cont [11/16] %v2204, 128
    %2611 = vxpose.xlu0.b32.cont [12/16] %v2209, 128
    %2612 = vxpose.xlu0.b32.cont [13/16] %v2214, 128
    %2613 = vxpose.xlu0.b32.cont [14/16] %v2219, 128
    %2614 = vxpose.xlu0.b32.cont [15/16] %v2224, 128
    %2615 = vxpose.xlu0.b32.end [16/16] %v2229, 128
    %v2616 = vpop.trf.xlu0
    %v2617 = vpop.trf.xlu0
    %v2618 = vpop.trf.xlu0
    %v2619 = vpop.trf.xlu0
    %v2620 = vpop.trf.xlu0
    %v2621 = vpop.trf.xlu0
    %v2622 = vpop.trf.xlu0
    %v2623 = vpop.trf.xlu0
    %v2624 = vpop.trf.xlu0
    %v2625 = vpop.trf.xlu0
    %v2626 = vpop.trf.xlu0
    %v2627 = vpop.trf.xlu0
    %v2628 = vpop.trf.xlu0
    %v2629 = vpop.trf.xlu0
    %v2630 = vpop.trf.xlu0
    %v2631 = vpop.trf.xlu0
    %2632 = vxpose.xlu0.b32.start [1/16] %v2234, 128
    %2633 = vxpose.xlu0.b32.cont [2/16] %v2239, 128
    %2634 = vxpose.xlu0.b32.cont [3/16] %v2244, 128
    %2635 = vxpose.xlu0.b32.cont [4/16] %v2249, 128
    %2636 = vxpose.xlu0.b32.cont [5/16] %v2254, 128
    %2637 = vxpose.xlu0.b32.cont [6/16] %v2259, 128
    %2638 = vxpose.xlu0.b32.cont [7/16] %v2264, 128
    %2639 = vxpose.xlu0.b32.cont [8/16] %v2269, 128
    %2640 = vxpose.xlu0.b32.cont [9/16] %v2274, 128
    %2641 = vxpose.xlu0.b32.cont [10/16] %v2279, 128
    %2642 = vxpose.xlu0.b32.cont [11/16] %v2284, 128
    %2643 = vxpose.xlu0.b32.cont [12/16] %v2289, 128
    %2644 = vxpose.xlu0.b32.cont [13/16] %v2294, 128
    %2645 = vxpose.xlu0.b32.cont [14/16] %v2299, 128
    %2646 = vxpose.xlu0.b32.cont [15/16] %v2304, 128
    %2647 = vxpose.xlu0.b32.end [16/16] %v2309, 128
    %v2648 = vpop.trf.xlu0
    %v2649 = vpop.trf.xlu0
    %v2650 = vpop.trf.xlu0
    %v2651 = vpop.trf.xlu0
    %v2652 = vpop.trf.xlu0
    %v2653 = vpop.trf.xlu0
    %v2654 = vpop.trf.xlu0
    %v2655 = vpop.trf.xlu0
    %v2656 = vpop.trf.xlu0
    %v2657 = vpop.trf.xlu0
    %v2658 = vpop.trf.xlu0
    %v2659 = vpop.trf.xlu0
    %v2660 = vpop.trf.xlu0
    %v2661 = vpop.trf.xlu0
    %v2662 = vpop.trf.xlu0
    %v2663 = vpop.trf.xlu0
    %2664 = vxpose.xlu0.b32.start [1/16] %v2314, 128
    %2665 = vxpose.xlu0.b32.cont [2/16] %v2319, 128
    %2666 = vxpose.xlu0.b32.cont [3/16] %v2324, 128
    %2667 = vxpose.xlu0.b32.cont [4/16] %v2329, 128
    %2668 = vxpose.xlu0.b32.cont [5/16] %v2334, 128
    %2669 = vxpose.xlu0.b32.cont [6/16] %v2339, 128
    %2670 = vxpose.xlu0.b32.cont [7/16] %v2344, 128
    %2671 = vxpose.xlu0.b32.cont [8/16] %v2349, 128
    %2672 = vxpose.xlu0.b32.cont [9/16] %v2354, 128
    %2673 = vxpose.xlu0.b32.cont [10/16] %v2359, 128
    %2674 = vxpose.xlu0.b32.cont [11/16] %v2364, 128
    %2675 = vxpose.xlu0.b32.cont [12/16] %v2369, 128
    %2676 = vxpose.xlu0.b32.cont [13/16] %v2374, 128
    %2677 = vxpose.xlu0.b32.cont [14/16] %v2379, 128
    %2678 = vxpose.xlu0.b32.cont [15/16] %v2384, 128
    %2679 = vxpose.xlu0.b32.end [16/16] %v2389, 128
    %v2680 = vpop.trf.xlu0
    %v2681 = vpop.trf.xlu0
    %v2682 = vpop.trf.xlu0
    %v2683 = vpop.trf.xlu0
    %v2684 = vpop.trf.xlu0
    %v2685 = vpop.trf.xlu0
    %v2686 = vpop.trf.xlu0
    %v2687 = vpop.trf.xlu0
    %v2688 = vpop.trf.xlu0
    %v2689 = vpop.trf.xlu0
    %v2690 = vpop.trf.xlu0
    %v2691 = vpop.trf.xlu0
    %v2692 = vpop.trf.xlu0
    %v2693 = vpop.trf.xlu0
    %v2694 = vpop.trf.xlu0
    %v2695 = vpop.trf.xlu0
    %2696 = vxpose.xlu0.b32.start [1/16] %v2394, 128
    %2697 = vxpose.xlu0.b32.cont [2/16] %v2399, 128
    %2698 = vxpose.xlu0.b32.cont [3/16] %v2404, 128
    %2699 = vxpose.xlu0.b32.cont [4/16] %v2409, 128
    %2700 = vxpose.xlu0.b32.cont [5/16] %v2414, 128
    %2701 = vxpose.xlu0.b32.cont [6/16] %v2419, 128
    %2702 = vxpose.xlu0.b32.cont [7/16] %v2424, 128
    %2703 = vxpose.xlu0.b32.cont [8/16] %v2429, 128
    %2704 = vxpose.xlu0.b32.cont [9/16] %v2434, 128
    %2705 = vxpose.xlu0.b32.cont [10/16] %v2439, 128
    %2706 = vxpose.xlu0.b32.cont [11/16] %v2444, 128
    %2707 = vxpose.xlu0.b32.cont [12/16] %v2449, 128
    %2708 = vxpose.xlu0.b32.cont [13/16] %v2454, 128
    %2709 = vxpose.xlu0.b32.cont [14/16] %v2459, 128
    %2710 = vxpose.xlu0.b32.cont [15/16] %v2464, 128
    %2711 = vxpose.xlu0.b32.end [16/16] %v2469, 128
    %v2712 = vpop.trf.xlu0
    %v2713 = vpop.trf.xlu0
    %v2714 = vpop.trf.xlu0
    %v2715 = vpop.trf.xlu0
    %v2716 = vpop.trf.xlu0
    %v2717 = vpop.trf.xlu0
    %v2718 = vpop.trf.xlu0
    %v2719 = vpop.trf.xlu0
    %v2720 = vpop.trf.xlu0
    %v2721 = vpop.trf.xlu0
    %v2722 = vpop.trf.xlu0
    %v2723 = vpop.trf.xlu0
    %v2724 = vpop.trf.xlu0
    %v2725 = vpop.trf.xlu0
    %v2726 = vpop.trf.xlu0
    %v2727 = vpop.trf.xlu0
    %s2728 = sld [smem:[#allocation2]]
    %v2729 = vstv %s2728
    %v2730 = vadd.f32 %v2488, %v2729
    %v2731 = vadd.f32 %v2520, %v2729
    %v2732 = vadd.f32 %v2552, %v2729
    %v2733 = vadd.f32 %v2584, %v2729
    %v2734 = vadd.f32 %v2616, %v2729
    %v2735 = vadd.f32 %v2648, %v2729
    %v2736 = vadd.f32 %v2680, %v2729
    %v2737 = vadd.f32 %v2712, %v2729
    %v2738 = vmax.f32 %v2730, 0.0
    %v2739 = vmax.f32 %v2731, 0.0
    %v2740 = vmax.f32 %v2732, 0.0
    %v2741 = vmax.f32 %v2733, 0.0
    %v2742 = vmax.f32 %v2734, 0.0
    %v2743 = vmax.f32 %v2735, 0.0
    %v2744 = vmax.f32 %v2736, 0.0
    %v2745 = vmax.f32 %v2737, 0.0
    %v2746 = vand.u32 2147483647, %v2730
    %v2747 = vand.u32 2147483647, %v2731
    %v2748 = vand.u32 2147483647, %v2732
    %v2749 = vand.u32 2147483647, %v2733
    %v2750 = vand.u32 2147483647, %v2734
    %v2751 = vand.u32 2147483647, %v2735
    %v2752 = vand.u32 2147483647, %v2736
    %v2753 = vand.u32 2147483647, %v2737
    %v2754 = vsub.f32 0.0, %v2746
    %v2755 = vsub.f32 0.0, %v2747
    %v2756 = vsub.f32 0.0, %v2748
    %v2757 = vsub.f32 0.0, %v2749
    %v2758 = vsub.f32 0.0, %v2750
    %v2759 = vsub.f32 0.0, %v2751
    %v2760 = vsub.f32 0.0, %v2752
    %v2761 = vsub.f32 0.0, %v2753
    %v2762 = vmul.f32 %v2754, 1.442695
    %v2763 = vpow.pop %v2762
    %v2764 = vmul.f32 %v2755, 1.442695
    %v2765 = vpow.pop %v2764
    %v2766 = vmul.f32 %v2756, 1.442695
    %v2767 = vpow.pop %v2766
    %v2768 = vmul.f32 %v2757, 1.442695
    %v2769 = vpow.pop %v2768
    %v2770 = vmul.f32 %v2758, 1.442695
    %v2771 = vpow.pop %v2770
    %v2772 = vmul.f32 %v2759, 1.442695
    %v2773 = vpow.pop %v2772
    %v2774 = vmul.f32 %v2760, 1.442695
    %v2775 = vpow.pop %v2774
    %v2776 = vmul.f32 %v2761, 1.442695
    %v2777 = vpow.pop %v2776
    %v2778 = vadd.f32 %v2763, 1.0
    %v2779 = vlog2.pop %v2778
    %v2780 = vmul.f32 %v2779, 0.6931472
    %v2781 = vmul.f32 -0.5, %v2763
    %v2782 = vadd.f32 %v2781, 1.0
    %v2783 = vmul.f32 %v2782, %v2763
    %v2784 = vand.u32 2147483647, %v2763
    %vm2785 = vcmp.lt.f32.partialorder %v2784, 0.0004427343
    %v2786 = vsel %vm2785, %v2783, %v2780
    %v2787 = vadd.f32 %v2765, 1.0
    %v2788 = vlog2.pop %v2787
    %v2789 = vmul.f32 %v2788, 0.6931472
    %v2790 = vmul.f32 -0.5, %v2765
    %v2791 = vadd.f32 %v2790, 1.0
    %v2792 = vmul.f32 %v2791, %v2765
    %v2793 = vand.u32 2147483647, %v2765
    %vm2794 = vcmp.lt.f32.partialorder %v2793, 0.0004427343
    %v2795 = vsel %vm2794, %v2792, %v2789
    %v2796 = vadd.f32 %v2767, 1.0
    %v2797 = vlog2.pop %v2796
    %v2798 = vmul.f32 %v2797, 0.6931472
    %v2799 = vmul.f32 -0.5, %v2767
    %v2800 = vadd.f32 %v2799, 1.0
    %v2801 = vmul.f32 %v2800, %v2767
    %v2802 = vand.u32 2147483647, %v2767
    %vm2803 = vcmp.lt.f32.partialorder %v2802, 0.0004427343
    %v2804 = vsel %vm2803, %v2801, %v2798
    %v2805 = vadd.f32 %v2769, 1.0
    %v2806 = vlog2.pop %v2805
    %v2807 = vmul.f32 %v2806, 0.6931472
    %v2808 = vmul.f32 -0.5, %v2769
    %v2809 = vadd.f32 %v2808, 1.0
    %v2810 = vmul.f32 %v2809, %v2769
    %v2811 = vand.u32 2147483647, %v2769
    %vm2812 = vcmp.lt.f32.partialorder %v2811, 0.0004427343
    %v2813 = vsel %vm2812, %v2810, %v2807
    %v2814 = vadd.f32 %v2771, 1.0
    %v2815 = vlog2.pop %v2814
    %v2816 = vmul.f32 %v2815, 0.6931472
    %v2817 = vmul.f32 -0.5, %v2771
    %v2818 = vadd.f32 %v2817, 1.0
    %v2819 = vmul.f32 %v2818, %v2771
    %v2820 = vand.u32 2147483647, %v2771
    %vm2821 = vcmp.lt.f32.partialorder %v2820, 0.0004427343
    %v2822 = vsel %vm2821, %v2819, %v2816
    %v2823 = vadd.f32 %v2773, 1.0
    %v2824 = vlog2.pop %v2823
    %v2825 = vmul.f32 %v2824, 0.6931472
    %v2826 = vmul.f32 -0.5, %v2773
    %v2827 = vadd.f32 %v2826, 1.0
    %v2828 = vmul.f32 %v2827, %v2773
    %v2829 = vand.u32 2147483647, %v2773
    %vm2830 = vcmp.lt.f32.partialorder %v2829, 0.0004427343
    %v2831 = vsel %vm2830, %v2828, %v2825
    %v2832 = vadd.f32 %v2775, 1.0
    %v2833 = vlog2.pop %v2832
    %v2834 = vmul.f32 %v2833, 0.6931472
    %v2835 = vmul.f32 -0.5, %v2775
    %v2836 = vadd.f32 %v2835, 1.0
    %v2837 = vmul.f32 %v2836, %v2775
    %v2838 = vand.u32 2147483647, %v2775
    %vm2839 = vcmp.lt.f32.partialorder %v2838, 0.0004427343
    %v2840 = vsel %vm2839, %v2837, %v2834
    %v2841 = vadd.f32 %v2777, 1.0
    %v2842 = vlog2.pop %v2841
    %v2843 = vmul.f32 %v2842, 0.6931472
    %v2844 = vmul.f32 -0.5, %v2777
    %v2845 = vadd.f32 %v2844, 1.0
    %v2846 = vmul.f32 %v2845, %v2777
    %v2847 = vand.u32 2147483647, %v2777
    %vm2848 = vcmp.lt.f32.partialorder %v2847, 0.0004427343
    %v2849 = vsel %vm2848, %v2846, %v2843
    %v2850 = vadd.f32 %v2738, %v2786
    %v2851 = vadd.f32 %v2739, %v2795
    %v2852 = vadd.f32 %v2740, %v2804
    %v2853 = vadd.f32 %v2741, %v2813
    %v2854 = vadd.f32 %v2742, %v2822
    %v2855 = vadd.f32 %v2743, %v2831
    %v2856 = vadd.f32 %v2744, %v2840
    %v2857 = vadd.f32 %v2745, %v2849
    %v2866 = vcombine.low %v2850, %v2851
    %v2867 = vcombine.low %v2852, %v2853
    %v2868 = vcombine.low %v2854, %v2855
    %v2869 = vcombine.low %v2856, %v2857
    %v2871 = vunpack.c.l.s4 1966171168
    %v2872 = vunpack.c.0.s8 %v2871
    %v2873 = vlaneseq
    %v2874 = vshrl.u32 %v2873, 7
    %v2875 = vsub.s32 %v2872, %v2874
    %v2876 = vrot.slane %v2866, %v2875
    %v2878 = vunpack.c.l.s4 1966171168
    %v2879 = vunpack.c.0.s8 %v2878
    %v2880 = vlaneseq
    %v2881 = vshrl.u32 %v2880, 7
    %v2882 = vsub.s32 %v2879, %v2881
    %v2883 = vrot.slane %v2867, %v2882
    %v2885 = vunpack.c.l.s4 1966171168
    %v2886 = vunpack.c.0.s8 %v2885
    %v2887 = vlaneseq
    %v2888 = vshrl.u32 %v2887, 7
    %v2889 = vsub.s32 %v2886, %v2888
    %v2890 = vrot.slane %v2868, %v2889
    %v2892 = vunpack.c.l.s4 1966171168
    %v2893 = vunpack.c.0.s8 %v2892
    %v2894 = vlaneseq
    %v2895 = vshrl.u32 %v2894, 7
    %v2896 = vsub.s32 %v2893, %v2895
    %v2897 = vrot.slane %v2869, %v2896
    %v2898 = vcombine.low %v2876, %v2883
    %v2899 = vcombine.low %v2890, %v2897
    %v2901 = vunpack.c.l.s4 1966171168
    %v2902 = vunpack.c.0.s8 %v2901
    %v2903 = vlaneseq
    %v2904 = vshrl.u32 %v2903, 7
    %v2905 = vsub.s32 %v2902, %v2904
    %v2906 = vrot.slane %v2898, %v2905
    %v2908 = vunpack.c.l.s4 1966171168
    %v2909 = vunpack.c.0.s8 %v2908
    %v2910 = vlaneseq
    %v2911 = vshrl.u32 %v2910, 7
    %v2912 = vsub.s32 %v2909, %v2911
    %v2913 = vrot.slane %v2899, %v2912
    %v2914 = vcombine.low %v2906, %v2913
    %2916 = vst [vmem:[#allocation3] sm:$0xff] %v2914
    // Predicated region
    $region22: #{tpu_custom_call.1} parent=1 // pred_check
      _
    $region23: #{tpu_custom_call.1} parent=1 // pred_check_branch
      %2918 = sbr.rel (0) target = $region25
    $region24: #{tpu_custom_call.1} parent=1 // pred_region
      %s2920 = ssub.s32 128, 128
      %2921 = vsyncadd [#allocation4], %s2920
      %s2923 = sshll.u32 [#allocation3], 4
      %s2924 = int_to_ptr.vmem [resolvable:$true] %s2923
      %2926 = dma.vmem_to_hbm [thread:$0]  %s2924, 128, %s5, [#allocation4]
    $region25: #{tpu_custom_call.1} parent=1 // pred_fallthru
      _
    // Predicated region
    $region26: #{tpu_custom_call.1} parent=1 // pred_check
      _
    $region27: #{tpu_custom_call.1} parent=1 // pred_check_branch
      %2928 = sbr.rel (0) target = $region29
    $region28: #{tpu_custom_call.1} parent=1 // pred_region
      %2929 = dma.done [#allocation4], 128
    $region29: #{tpu_custom_call.1} parent=1 // pred_fallthru
      _
    %2930 = vsyncpa [#allocation4], 1

</llo_original>
